<compile_context>
chip_gen: v5e
topology: v5e:2x2
jax: 0.10.0
libtpu: 0.0.40
codegen_flags: <defaults>
</compile_context>

<pallas_src>
import math
from functools import partial

import jax
import jax.numpy as jnp
from jax import lax
from jax.experimental import pallas as pl
from jax.experimental.pallas import tpu as pltpu


# --------------------------------------------------------------------------
# row-tiling helpers (always pad instead of falling back to one giant block)
# --------------------------------------------------------------------------
def _round_up(x, m):
    return ((x + m - 1) // m) * m


def _pick_tile(rows, target):
    """Row tile (multiple of 8) and padded row count divisible by the tile."""
    if rows <= target:
        rp = max(_round_up(rows, 8), 8)
        return rp, rp
    rp = _round_up(rows, target)
    return target, rp


def _pad_rows(a, rp):
    r = a.shape[0]
    if rp == r:
        return a
    return jnp.pad(a, ((0, rp - r),) + ((0, 0),) * (a.ndim - 1))


# --------------------------------------------------------------------------
# Conv1d(kernel_size=1) == row-tiled linear (used for the fused K/V projection)
# --------------------------------------------------------------------------
def _linear_kernel(x_ref, w_ref, b_ref, o_ref):
    acc = jnp.dot(x_ref[...], w_ref[...], preferred_element_type=jnp.float32)
    o_ref[...] = (acc + b_ref[...]).astype(o_ref.dtype)


def pallas_linear(x, w, b, out_dtype, target=512):
    """x: (R, Cin) bf16, w: (Cin, Cout) bf16, b: (Cout,) f32 -> (R, Cout)."""
    R, Cin = x.shape
    Cout = w.shape[1]
    tm, Rp = _pick_tile(R, target)
    out = pl.pallas_call(
        _linear_kernel,
        out_shape=jax.ShapeDtypeStruct((Rp, Cout), out_dtype),
        grid=(Rp // tm,),
        in_specs=[
            pl.BlockSpec((tm, Cin), lambda i: (i, 0)),
            pl.BlockSpec((Cin, Cout), lambda i: (0, 0)),
            pl.BlockSpec((1, Cout), lambda i: (0, 0)),
        ],
        out_specs=pl.BlockSpec((tm, Cout), lambda i: (i, 0)),
        compiler_params=pltpu.CompilerParams(dimension_semantics=("parallel",)),
    )(_pad_rows(x, Rp), w, b.reshape(1, Cout))
    return out[:R]


# --------------------------------------------------------------------------
# Fused Q-projection + multi-head attention + merge Conv1d.
# --------------------------------------------------------------------------
def _qproj_attn_merge_kernel(x_ref, wq_ref, bq_ref, kv_ref, wm_ref, bm_ref,
                             o_ref, attn_sc, *, num_heads, head_dim):
    D = num_heads * head_dim
    # fused Q projection (1/sqrt(head_dim) already folded into wq/bq)
    q = (jnp.dot(x_ref[...], wq_ref[...], preferred_element_type=jnp.float32)
         + bq_ref[...]).astype(jnp.bfloat16)                      # (tq, D)
    kv = kv_ref[...]                                              # (M, 2D) bf16
    for h in range(num_heads):                                    # H small, static
        lo = h * head_dim
        qh = q[:, lo:lo + head_dim]                               # (tq, hd)
        kh = kv[:, lo:lo + head_dim]                              # (M,  hd)
        vh = kv[:, D + lo:D + lo + head_dim]                      # (M,  hd)
        # scores: contract the head dim directly (no k.T materialization)
        s = lax.dot_general(qh, kh, (((1,), (1,)), ((), ())),
                            preferred_element_type=jnp.float32)   # (tq, M)
        s = s - jnp.max(s, axis=-1, keepdims=True)                # f32 softmax
        e = jnp.exp(s)
        denom = jnp.sum(e, axis=-1, keepdims=True)
        oh = jnp.dot(e.astype(jnp.bfloat16), vh,
                     preferred_element_type=jnp.float32)          # (tq, hd)
        # deferred normalization: scale the small (tq, hd) result, not (tq, M)
        attn_sc[:, lo:lo + head_dim] = oh * pl.reciprocal(denom, approx=True)
    # one consolidated K=D merge matmul (merge Conv1d fused, full MXU depth)
    attn = attn_sc[...].astype(jnp.bfloat16)
    out = jnp.dot(attn, wm_ref[...], preferred_element_type=jnp.float32)
    o_ref[...] = (out + bm_ref[...]).astype(o_ref.dtype)


def pallas_attention_merge(x, kv, wq, bq, wm, bm, num_heads, target=256):
    """x: (B, N, D) bf16, kv: (B, M, 2D) bf16 -> message: (B, N, D) bf16."""
    B, N, D = x.shape
    M = kv.shape[1]
    hd = D // num_heads
    tq, Np = _pick_tile(N, target)          # cap tq (VMEM: score/exp intermediates)
    if Np != N:
        x = jnp.pad(x, ((0, 0), (0, Np - N), (0, 0)))
    kern = partial(_qproj_attn_merge_kernel, num_heads=num_heads, head_dim=hd)
    out = pl.pallas_call(
        kern,
        out_shape=jax.ShapeDtypeStruct((B, Np, D), jnp.bfloat16),
        grid=(B, Np // tq),
        in_specs=[
            pl.BlockSpec((None, tq, D), lambda b, i: (b, i, 0)),
            pl.BlockSpec((D, D), lambda b, i: (0, 0)),
            pl.BlockSpec((1, D), lambda b, i: (0, 0)),
            pl.BlockSpec((None, M, 2 * D), lambda b, i: (b, 0, 0)),
            pl.BlockSpec((D, D), lambda b, i: (0, 0)),
            pl.BlockSpec((1, D), lambda b, i: (0, 0)),
        ],
        out_specs=pl.BlockSpec((None, tq, D), lambda b, i: (b, i, 0)),
        scratch_shapes=[pltpu.VMEM((tq, D), jnp.float32)],
        compiler_params=pltpu.CompilerParams(
            dimension_semantics=("parallel", "parallel")),
    )(x, wq, bq.reshape(1, D), kv, wm, bm.reshape(1, D))
    return out[:, :N]


# --------------------------------------------------------------------------
# First MLP layer with torch.cat fused away + BatchNorm partial statistics
# emitted from the live f32 accumulator (no separate stats pass over h1).
# --------------------------------------------------------------------------
def _cat_linear_bnstats_kernel(x_ref, m_ref, wa_ref, wb_ref, b_ref,
                               h_ref, psum_ref, psq_ref, *,
                               rows_valid, padded_rows, tm):
    acc = jnp.dot(x_ref[...], wa_ref[...], preferred_element_type=jnp.float32)
    acc = acc + jnp.dot(m_ref[...], wb_ref[...], preferred_element_type=jnp.float32)
    acc = acc + b_ref[...]
    h_ref[...] = acc.astype(h_ref.dtype)          # h1 stored bf16
    if rows_valid == padded_rows:                 # common case: no row padding
        am = acc
    else:                                         # mask padded rows out of stats
        row = pl.program_id(0) * tm + lax.broadcasted_iota(jnp.int32, (tm, 1), 0)
        am = acc * (row < rows_valid).astype(jnp.float32)
    psum_ref[...] = jnp.sum(am, axis=0, keepdims=True)
    psq_ref[...] = jnp.sum(acc * am, axis=0, keepdims=True)


def pallas_cat_linear_bnstats(x, msg, wa, wb, b, rows_valid, target=512):
    """h1 = x @ wa + msg @ wb + b (bf16), plus per-tile (sum, sum^2) partials."""
    R, D = x.shape
    C = wa.shape[1]
    tm, Rp = _pick_tile(R, target)
    n_tiles = Rp // tm
    kern = partial(_cat_linear_bnstats_kernel,
                   rows_valid=rows_valid, padded_rows=Rp, tm=tm)
    return pl.pallas_call(
        kern,
        out_shape=(jax.ShapeDtypeStruct((Rp, C), jnp.bfloat16),
                   jax.ShapeDtypeStruct((n_tiles, 1, C), jnp.float32),
                   jax.ShapeDtypeStruct((n_tiles, 1, C), jnp.float32)),
        grid=(n_tiles,),
        in_specs=[
            pl.BlockSpec((tm, D), lambda i: (i, 0)),
            pl.BlockSpec((tm, D), lambda i: (i, 0)),
            pl.BlockSpec((D, C), lambda i: (0, 0)),
            pl.BlockSpec((D, C), lambda i: (0, 0)),
            pl.BlockSpec((1, C), lambda i: (0, 0)),
        ],
        out_specs=(pl.BlockSpec((tm, C), lambda i: (i, 0)),
                   pl.BlockSpec((None, 1, C), lambda i: (i, 0, 0)),
                   pl.BlockSpec((None, 1, C), lambda i: (i, 0, 0))),
        compiler_params=pltpu.CompilerParams(dimension_semantics=("parallel",)),
    )(_pad_rows(x, Rp), _pad_rows(msg, Rp), wa, wb, b.reshape(1, C))


# --------------------------------------------------------------------------
# BatchNorm (training-mode batch stats) + ReLU fused into the last Conv1d
# --------------------------------------------------------------------------
def _bn_relu_linear_kernel(h_ref, mean_ref, var_ref, g_ref, bt_ref,
                           w_ref, b_ref, o_ref, *, eps):
    scale = g_ref[...] * lax.rsqrt(var_ref[...] + eps)            # (1, C) f32
    shift = bt_ref[...] - mean_ref[...] * scale
    y = jnp.maximum(h_ref[...].astype(jnp.float32) * scale + shift, 0.0)
    acc = jnp.dot(y.astype(jnp.bfloat16), w_ref[...],
                  preferred_element_type=jnp.float32)
    o_ref[...] = (acc + b_ref[...]).astype(o_ref.dtype)


def pallas_bn_relu_linear(h1, mean, var, gamma, beta, w2, b2, eps=1e-5,
                          target=512):
    Rp, C = h1.shape                              # h1 comes pre-padded
    Dout = w2.shape[1]
    tm, _ = _pick_tile(Rp, target)
    kern = partial(_bn_relu_linear_kernel, eps=eps)
    return pl.pallas_call(
        kern,
        out_shape=jax.ShapeDtypeStruct((Rp, Dout), jnp.float32),
        grid=(Rp // tm,),
        in_specs=[
            pl.BlockSpec((tm, C), lambda i: (i, 0)),
            pl.BlockSpec((1, C), lambda i: (0, 0)),
            pl.BlockSpec((1, C), lambda i: (0, 0)),
            pl.BlockSpec((1, C), lambda i: (0, 0)),
            pl.BlockSpec((1, C), lambda i: (0, 0)),
            pl.BlockSpec((C, Dout), lambda i: (0, 0)),
            pl.BlockSpec((1, Dout), lambda i: (0, 0)),
        ],
        out_specs=pl.BlockSpec((tm, Dout), lambda i: (i, 0)),
        compiler_params=pltpu.CompilerParams(dimension_semantics=("parallel",)),
    )(h1, mean, var, gamma.reshape(1, C), beta.reshape(1, C),
      w2, b2.reshape(1, Dout))


# --------------------------------------------------------------------------
# Full module forward (layout plumbing in plain JAX)
# --------------------------------------------------------------------------
def attentional_propagation_forward(x_bdn, src_bdm, params, num_heads):
    B, D, N = x_bdn.shape
    M = src_bdm.shape[2]
    H = num_heads
    hd = D // H

    # channels-last + cast to bf16 once (all downstream matmul operands bf16)
    x = jnp.transpose(x_bdn, (0, 2, 1)).astype(jnp.bfloat16)      # (B, N, D)
    src = jnp.transpose(src_bdm, (0, 2, 1)).astype(jnp.bfloat16)  # (B, M, D)

    # PyTorch .view(b, hd, H, L) splits channel d_old = i*H + h.  Permute the
    # projection output channels so head h occupies the contiguous lane slice
    # [h*hd, (h+1)*hd); permute the merge-weight rows to compensate.
    perm = (jnp.arange(hd)[None, :] * H + jnp.arange(H)[:, None]).reshape(-1)
    scale = 1.0 / math.sqrt(hd)
    wq_p = (params["wq"][:, perm] * scale).astype(jnp.bfloat16)   # fold 1/sqrt(hd)
    bq_p = params["bq"][perm] * scale
    wkv_p = jnp.concatenate([params["wk"][:, perm], params["wv"][:, perm]],
                            axis=1).astype(jnp.bfloat16)
    bkv_p = jnp.concatenate([params["bk"][perm], params["bv"][perm]])
    wm_p = params["wm"][perm, :].astype(jnp.bfloat16)

    # fused K/V projection of `source`
    kv = pallas_linear(src.reshape(B * M, D), wkv_p, bkv_p, jnp.bfloat16)
    kv = kv.reshape(B, M, 2 * D)

    # Q projection + multi-head attention + merge Conv1d, one fused kernel
    msg = pallas_attention_merge(x, kv, wq_p, bq_p, wm_p, params["bm"], H)

    # first MLP layer (concat fused away) + BN partial stats in one kernel
    R = B * N
    C = 2 * D
    w1 = params["w1"].astype(jnp.bfloat16)
    h1, psum, psq = pallas_cat_linear_bnstats(
        x.reshape(R, D), msg.reshape(R, D), w1[:D], w1[D:], params["b1"], R)
    mean = (jnp.sum(psum.reshape(-1, C), axis=0) / R).reshape(1, C)
    var = (jnp.sum(psq.reshape(-1, C), axis=0) / R).reshape(1, C) - mean * mean

    # BN + ReLU fused into the last Conv1d
    out = pallas_bn_relu_linear(h1, mean, var, params["bn_g"], params["bn_b"],
                                params["w2"].astype(jnp.bfloat16), params["b2"])
    out = out[:R].reshape(B, N, D)
    return jnp.transpose(out, (0, 2, 1))          # (B, D, N), matching PyTorch


# --------------------------------------------------------------------------
# Deterministic parameter init (shapes from the PyTorch module __init__)
# --------------------------------------------------------------------------
def init_params(key, num_dim):
    D = num_dim
    keys = jax.random.split(key, 13)

    def wmat(k, cin, cout):
        return jax.random.normal(k, (cin, cout), jnp.float32) / math.sqrt(cin)

    def bvec(k, c):
        return 0.05 * jax.random.normal(k, (c,), jnp.float32)

    return {
        "wq": wmat(keys[0], D, D), "bq": bvec(keys[1], D),
        "wk": wmat(keys[2], D, D), "bk": bvec(keys[3], D),
        "wv": wmat(keys[4], D, D), "bv": bvec(keys[5], D),
        "wm": wmat(keys[6], D, D), "bm": bvec(keys[7], D),
        "w1": wmat(keys[8], 2 * D, 2 * D), "b1": bvec(keys[9], 2 * D),
        "bn_g": 1.0 + 0.1 * jax.random.normal(keys[10], (2 * D,), jnp.float32),
        "bn_b": 0.05 * jax.random.normal(keys[11], (2 * D,), jnp.float32),
        "w2": wmat(keys[12], 2 * D, D),
        "b2": jnp.zeros((D,), jnp.float32),   # nn.init.constant_(self.mlp[-1].bias, 0.0)
    }


# --------------------------------------------------------------------------
# Pure-JAX f32 reference mirroring the PyTorch einsums / views exactly
# --------------------------------------------------------------------------
def reference_forward(x_bdn, src_bdm, params, num_heads):
    B, D, N = x_bdn.shape
    H = num_heads
    hd = D // H

    def conv1d(t, w, b):   # t: (B, Cin, L); w stored as (Cin, Cout)
        return jnp.einsum("io,bil->bol", w, t) + b[None, :, None]

    q = conv1d(x_bdn, params["wq"], params["bq"]).reshape(B, hd, H, N)
    k = conv1d(src_bdm, params["wk"], params["bk"]).reshape(B, hd, H, -1)
    v = conv1d(src_bdm, params["wv"], params["bv"]).reshape(B, hd, H, -1)
    scores = jnp.einsum("bdhn,bdhm->bhnm", q, k) / math.sqrt(hd)
    prob = jax.nn.softmax(scores, axis=-1)
    xo = jnp.einsum("bhnm,bdhm->bdhn", prob, v).reshape(B, D, N)
    msg = conv1d(xo, params["wm"], params["bm"])
    cat = jnp.concatenate([x_bdn, msg], axis=1)
    h1 = conv1d(cat, params["w1"], params["b1"])
    mean = jnp.mean(h1, axis=(0, 2), keepdims=True)
    var = jnp.mean(jnp.square(h1 - mean), axis=(0, 2), keepdims=True)
    h1 = (h1 - mean) / jnp.sqrt(var + 1e-5)
    h1 = h1 * params["bn_g"][None, :, None] + params["bn_b"][None, :, None]
    h1 = jnp.maximum(h1, 0.0)
    return conv1d(h1, params["w2"], params["b2"])


# --------------------------------------------------------------------------
if __name__ == "__main__":
    num_dim, num_heads = 32, 4
    B, N, M = 2, 8, 8

    key = jax.random.PRNGKey(0)
    kx, ks, kp = jax.random.split(key, 3)
    x = jax.random.normal(kx, (B, num_dim, N), jnp.float32)       # (B, D, N)
    source = jax.random.normal(ks, (B, num_dim, M), jnp.float32)  # (B, D, M)
    params = init_params(kp, num_dim)

    fwd = jax.jit(attentional_propagation_forward, static_argnums=(3,))
    out = fwd(x, source, params, num_heads)
    out = jax.block_until_ready(out)

    ref = reference_forward(x, source, params, num_heads)
    assert out.shape == (B, num_dim, N), out.shape
    max_err = float(jnp.max(jnp.abs(out - ref)))
    # bf16 matmul operands / bf16 h1 storage with f32 accumulation -> loose tol
    assert max_err < 1e-1, f"max_err={max_err}"

    print("KERNEL_OK")
</pallas_src>

<mosaic_0001>
module attributes {stable_mosaic.version = 11 : i64} {
  func.func @_linear_kernel(%arg0: i32, %arg1: memref<16x32xbf16, #tpu.memory_space<vmem>>, %arg2: memref<32x64xbf16, #tpu.memory_space<vmem>>, %arg3: memref<1x64xf32, #tpu.memory_space<vmem>>, %arg4: memref<16x64xbf16, #tpu.memory_space<vmem>>) attributes {dimension_semantics = [#tpu.dimension_semantics<parallel>], iteration_bounds = array<i64: 1>, scalar_prefetch = 0 : i64, scratch_operands = 0 : i64, tpu.core_type = #tpu.core_type<tc>, window_params = [{transform_indices = @transform_0, window_bounds = array<i64: 16, 32>}, {pipeline_mode = #tpu.pipeline_mode<synchronous>, transform_indices = @transform_1, window_bounds = array<i64: 32, 64>}, {pipeline_mode = #tpu.pipeline_mode<synchronous>, transform_indices = @transform_2, window_bounds = array<i64: 1, 64>}, {transform_indices = @transform_3, window_bounds = array<i64: 16, 64>}]} {
    %c0 = arith.constant 0 : index
    %c0_0 = arith.constant 0 : index
    %0 = vector.load %arg1[%c0, %c0_0] : memref<16x32xbf16, #tpu.memory_space<vmem>>, vector<16x32xbf16>
    %c0_1 = arith.constant 0 : index
    %c0_2 = arith.constant 0 : index
    %1 = vector.load %arg2[%c0_1, %c0_2] : memref<32x64xbf16, #tpu.memory_space<vmem>>, vector<32x64xbf16>
    %cst = arith.constant dense<0.000000e+00> : vector<16x64xf32>
    %2 = tpu.matmul %0, %1, %cst {dimension_numbers = #tpu.dot_dimension_numbers<[1], [0], [0], [1], [0, 0, 1, 1], [], []>} : vector<16x32xbf16>, vector<32x64xbf16>, vector<16x64xf32> -> vector<16x64xf32>
    %c0_3 = arith.constant 0 : index
    %c0_4 = arith.constant 0 : index
    %3 = vector.load %arg3[%c0_3, %c0_4] : memref<1x64xf32, #tpu.memory_space<vmem>>, vector<1x64xf32>
    %4 = vector.broadcast %3 : vector<1x64xf32> to vector<16x64xf32>
    %5 = arith.addf %2, %4 : vector<16x64xf32>
    %6 = arith.truncf %5 : vector<16x64xf32> to vector<16x64xbf16>
    %c0_5 = arith.constant 0 : index
    %c0_6 = arith.constant 0 : index
    %7 = vector.load %arg4[%c0_5, %c0_6] : memref<16x64xbf16, #tpu.memory_space<vmem>>, vector<16x64xbf16>
    tpu.vector_store %arg4[%c0_5, %c0_6], %6 {strides = array<i32>} : memref<16x64xbf16, #tpu.memory_space<vmem>>, vector<16x64xbf16>,
    return
  }
  func.func @transform_0(%arg0: i32) -> (i32, i32) {
    %c0_i32 = arith.constant 0 : i32
    %c0_i32_0 = arith.constant 0 : i32
    return %arg0, %c0_i32 : i32, i32
  }
  func.func @transform_1(%arg0: i32) -> (i32, i32) {
    %c0_i32 = arith.constant 0 : i32
    %c0_i32_0 = arith.constant 0 : i32
    %c0_i32_1 = arith.constant 0 : i32
    return %c0_i32, %c0_i32_0 : i32, i32
  }
  func.func @transform_2(%arg0: i32) -> (i32, i32) {
    %c0_i32 = arith.constant 0 : i32
    %c0_i32_0 = arith.constant 0 : i32
    %c0_i32_1 = arith.constant 0 : i32
    return %c0_i32, %c0_i32_0 : i32, i32
  }
  func.func @transform_3(%arg0: i32) -> (i32, i32) {
    %c0_i32 = arith.constant 0 : i32
    %c0_i32_0 = arith.constant 0 : i32
    return %arg0, %c0_i32 : i32, i32
  }
}

module attributes {stable_mosaic.version = 11 : i64} {
  func.func @_qproj_attn_merge_kernel(%arg0: i32, %arg1: i32, %arg2: memref<1x8x32xbf16, #tpu.memory_space<vmem>>, %arg3: memref<32x32xbf16, #tpu.memory_space<vmem>>, %arg4: memref<1x32xf32, #tpu.memory_space<vmem>>, %arg5: memref<1x8x64xbf16, #tpu.memory_space<vmem>>, %arg6: memref<32x32xbf16, #tpu.memory_space<vmem>>, %arg7: memref<1x32xf32, #tpu.memory_space<vmem>>, %arg8: memref<1x8x32xbf16, #tpu.memory_space<vmem>>, %arg9: memref<8x32xf32, #tpu.memory_space<vmem>>) attributes {dimension_semantics = [#tpu.dimension_semantics<parallel>, #tpu.dimension_semantics<parallel>], iteration_bounds = array<i64: 2, 1>, scalar_prefetch = 0 : i64, scratch_operands = 1 : i64, tpu.core_type = #tpu.core_type<tc>, window_params = [{transform_indices = @transform_0, window_bounds = array<i64: 1, 8, 32>}, {pipeline_mode = #tpu.pipeline_mode<synchronous>, transform_indices = @transform_1, window_bounds = array<i64: 32, 32>}, {pipeline_mode = #tpu.pipeline_mode<synchronous>, transform_indices = @transform_2, window_bounds = array<i64: 1, 32>}, {transform_indices = @transform_3, window_bounds = array<i64: 1, 8, 64>}, {pipeline_mode = #tpu.pipeline_mode<synchronous>, transform_indices = @transform_4, window_bounds = array<i64: 32, 32>}, {pipeline_mode = #tpu.pipeline_mode<synchronous>, transform_indices = @transform_5, window_bounds = array<i64: 1, 32>}, {transform_indices = @transform_6, window_bounds = array<i64: 1, 8, 32>}]} {
    %c0 = arith.constant 0 : index
    %c0_0 = arith.constant 0 : index
    %c0_1 = arith.constant 0 : index
    %0 = vector.load %arg2[%c0, %c0_0, %c0_1] : memref<1x8x32xbf16, #tpu.memory_space<vmem>>, vector<1x8x32xbf16>
    %1 = vector.shape_cast %0 : vector<1x8x32xbf16> to vector<8x32xbf16>
    %c0_2 = arith.constant 0 : index
    %c0_3 = arith.constant 0 : index
    %2 = vector.load %arg3[%c0_2, %c0_3] : memref<32x32xbf16, #tpu.memory_space<vmem>>, vector<32x32xbf16>
    %cst = arith.constant dense<0.000000e+00> : vector<8x32xf32>
    %3 = tpu.matmul %1, %2, %cst {dimension_numbers = #tpu.dot_dimension_numbers<[1], [0], [0], [1], [0, 0, 1, 1], [], []>} : vector<8x32xbf16>, vector<32x32xbf16>, vector<8x32xf32> -> vector<8x32xf32>
    %c0_4 = arith.constant 0 : index
    %c0_5 = arith.constant 0 : index
    %4 = vector.load %arg4[%c0_4, %c0_5] : memref<1x32xf32, #tpu.memory_space<vmem>>, vector<1x32xf32>
    %5 = vector.broadcast %4 : vector<1x32xf32> to vector<8x32xf32>
    %6 = arith.addf %3, %5 : vector<8x32xf32>
    %7 = arith.truncf %6 : vector<8x32xf32> to vector<8x32xbf16>
    %c0_6 = arith.constant 0 : index
    %c0_7 = arith.constant 0 : index
    %c0_8 = arith.constant 0 : index
    %8 = vector.load %arg5[%c0_6, %c0_7, %c0_8] : memref<1x8x64xbf16, #tpu.memory_space<vmem>>, vector<1x8x64xbf16>
    %9 = vector.shape_cast %8 : vector<1x8x64xbf16> to vector<8x64xbf16>
    %10 = vector.extract_strided_slice %7 {offsets = [0, 0], sizes = [8, 8], strides = [1, 1]} : vector<8x32xbf16> to vector<8x8xbf16>
    %11 = vector.extract_strided_slice %9 {offsets = [0, 0], sizes = [8, 8], strides = [1, 1]} : vector<8x64xbf16> to vector<8x8xbf16>
    %12 = vector.extract_strided_slice %9 {offsets = [0, 32], sizes = [8, 8], strides = [1, 1]} : vector<8x64xbf16> to vector<8x8xbf16>
    %cst_9 = arith.constant dense<0.000000e+00> : vector<8x8xf32>
    %13 = tpu.matmul %10, %11, %cst_9 {dimension_numbers = #tpu.dot_dimension_numbers<[1], [1], [0], [0], [0, 0, 1, 0], [], []>} : vector<8x8xbf16>, vector<8x8xbf16>, vector<8x8xf32> -> vector<8x8xf32>
    %cst_10 = arith.constant dense<0xFF800000> : vector<8xf32>
    %14 = vector.multi_reduction <maximumf>, %13, %cst_10 [1] : vector<8x8xf32> to vector<8xf32>
    %15 = vector.shape_cast %14 : vector<8xf32> to vector<8x1xf32>
    %16 = vector.broadcast %15 : vector<8x1xf32> to vector<8x8xf32>
    %17 = arith.subf %13, %16 : vector<8x8xf32>
    %18 = math.exp %17 : vector<8x8xf32>
    %cst_11 = arith.constant dense<0.000000e+00> : vector<8xf32>
    %19 = vector.multi_reduction <add>, %18, %cst_11 [1] : vector<8x8xf32> to vector<8xf32>
    %20 = vector.shape_cast %19 : vector<8xf32> to vector<8x1xf32>
    %21 = arith.truncf %18 : vector<8x8xf32> to vector<8x8xbf16>
    %cst_12 = arith.constant dense<0.000000e+00> : vector<8x8xf32>
    %22 = tpu.matmul %21, %12, %cst_12 {dimension_numbers = #tpu.dot_dimension_numbers<[1], [0], [0], [1], [0, 0, 1, 1], [], []>} : vector<8x8xbf16>, vector<8x8xbf16>, vector<8x8xf32> -> vector<8x8xf32>
    %23 = tpu.reciprocal %20 {approx = true} : vector<8x1xf32> -> vector<8x1xf32>
    %24 = vector.broadcast %23 : vector<8x1xf32> to vector<8x8xf32>
    %25 = arith.mulf %22, %24 : vector<8x8xf32>
    %c0_13 = arith.constant 0 : index
    %c0_14 = arith.constant 0 : index
    %26 = vector.load %arg9[%c0_13, %c0_14] : memref<8x32xf32, #tpu.memory_space<vmem>>, vector<8x8xf32>
    tpu.vector_store %arg9[%c0_13, %c0_14], %25 {strides = array<i32>} : memref<8x32xf32, #tpu.memory_space<vmem>>, vector<8x8xf32>,
    %27 = vector.extract_strided_slice %7 {offsets = [0, 8], sizes = [8, 8], strides = [1, 1]} : vector<8x32xbf16> to vector<8x8xbf16>
    %28 = vector.extract_strided_slice %9 {offsets = [0, 8], sizes = [8, 8], strides = [1, 1]} : vector<8x64xbf16> to vector<8x8xbf16>
    %29 = vector.extract_strided_slice %9 {offsets = [0, 40], sizes = [8, 8], strides = [1, 1]} : vector<8x64xbf16> to vector<8x8xbf16>
    %cst_15 = arith.constant dense<0.000000e+00> : vector<8x8xf32>
    %30 = tpu.matmul %27, %28, %cst_15 {dimension_numbers = #tpu.dot_dimension_numbers<[1], [1], [0], [0], [0, 0, 1, 0], [], []>} : vector<8x8xbf16>, vector<8x8xbf16>, vector<8x8xf32> -> vector<8x8xf32>
    %cst_16 = arith.constant dense<0xFF800000> : vector<8xf32>
    %31 = vector.multi_reduction <maximumf>, %30, %cst_16 [1] : vector<8x8xf32> to vector<8xf32>
    %32 = vector.shape_cast %31 : vector<8xf32> to vector<8x1xf32>
    %33 = vector.broadcast %32 : vector<8x1xf32> to vector<8x8xf32>
    %34 = arith.subf %30, %33 : vector<8x8xf32>
    %35 = math.exp %34 : vector<8x8xf32>
    %cst_17 = arith.constant dense<0.000000e+00> : vector<8xf32>
    %36 = vector.multi_reduction <add>, %35, %cst_17 [1] : vector<8x8xf32> to vector<8xf32>
    %37 = vector.shape_cast %36 : vector<8xf32> to vector<8x1xf32>
    %38 = arith.truncf %35 : vector<8x8xf32> to vector<8x8xbf16>
    %cst_18 = arith.constant dense<0.000000e+00> : vector<8x8xf32>
    %39 = tpu.matmul %38, %29, %cst_18 {dimension_numbers = #tpu.dot_dimension_numbers<[1], [0], [0], [1], [0, 0, 1, 1], [], []>} : vector<8x8xbf16>, vector<8x8xbf16>, vector<8x8xf32> -> vector<8x8xf32>
    %40 = tpu.reciprocal %37 {approx = true} : vector<8x1xf32> -> vector<8x1xf32>
    %41 = vector.broadcast %40 : vector<8x1xf32> to vector<8x8xf32>
    %42 = arith.mulf %39, %41 : vector<8x8xf32>
    %c0_19 = arith.constant 0 : index
    %c8 = arith.constant 8 : index
    %43 = vector.load %arg9[%c0_19, %c8] : memref<8x32xf32, #tpu.memory_space<vmem>>, vector<8x8xf32>
    tpu.vector_store %arg9[%c0_19, %c8], %42 {strides = array<i32>} : memref<8x32xf32, #tpu.memory_space<vmem>>, vector<8x8xf32>,
    %44 = vector.extract_strided_slice %7 {offsets = [0, 16], sizes = [8, 8], strides = [1, 1]} : vector<8x32xbf16> to vector<8x8xbf16>
    %45 = vector.extract_strided_slice %9 {offsets = [0, 16], sizes = [8, 8], strides = [1, 1]} : vector<8x64xbf16> to vector<8x8xbf16>
    %46 = vector.extract_strided_slice %9 {offsets = [0, 48], sizes = [8, 8], strides = [1, 1]} : vector<8x64xbf16> to vector<8x8xbf16>
    %cst_20 = arith.constant dense<0.000000e+00> : vector<8x8xf32>
    %47 = tpu.matmul %44, %45, %cst_20 {dimension_numbers = #tpu.dot_dimension_numbers<[1], [1], [0], [0], [0, 0, 1, 0], [], []>} : vector<8x8xbf16>, vector<8x8xbf16>, vector<8x8xf32> -> vector<8x8xf32>
    %cst_21 = arith.constant dense<0xFF800000> : vector<8xf32>
    %48 = vector.multi_reduction <maximumf>, %47, %cst_21 [1] : vector<8x8xf32> to vector<8xf32>
    %49 = vector.shape_cast %48 : vector<8xf32> to vector<8x1xf32>
    %50 = vector.broadcast %49 : vector<8x1xf32> to vector<8x8xf32>
    %51 = arith.subf %47, %50 : vector<8x8xf32>
    %52 = math.exp %51 : vector<8x8xf32>
    %cst_22 = arith.constant dense<0.000000e+00> : vector<8xf32>
    %53 = vector.multi_reduction <add>, %52, %cst_22 [1] : vector<8x8xf32> to vector<8xf32>
    %54 = vector.shape_cast %53 : vector<8xf32> to vector<8x1xf32>
    %55 = arith.truncf %52 : vector<8x8xf32> to vector<8x8xbf16>
    %cst_23 = arith.constant dense<0.000000e+00> : vector<8x8xf32>
    %56 = tpu.matmul %55, %46, %cst_23 {dimension_numbers = #tpu.dot_dimension_numbers<[1], [0], [0], [1], [0, 0, 1, 1], [], []>} : vector<8x8xbf16>, vector<8x8xbf16>, vector<8x8xf32> -> vector<8x8xf32>
    %57 = tpu.reciprocal %54 {approx = true} : vector<8x1xf32> -> vector<8x1xf32>
    %58 = vector.broadcast %57 : vector<8x1xf32> to vector<8x8xf32>
    %59 = arith.mulf %56, %58 : vector<8x8xf32>
    %c0_24 = arith.constant 0 : index
    %c16 = arith.constant 16 : index
    %60 = vector.load %arg9[%c0_24, %c16] : memref<8x32xf32, #tpu.memory_space<vmem>>, vector<8x8xf32>
    tpu.vector_store %arg9[%c0_24, %c16], %59 {strides = array<i32>} : memref<8x32xf32, #tpu.memory_space<vmem>>, vector<8x8xf32>,
    %61 = vector.extract_strided_slice %7 {offsets = [0, 24], sizes = [8, 8], strides = [1, 1]} : vector<8x32xbf16> to vector<8x8xbf16>
    %62 = vector.extract_strided_slice %9 {offsets = [0, 24], sizes = [8, 8], strides = [1, 1]} : vector<8x64xbf16> to vector<8x8xbf16>
    %63 = vector.extract_strided_slice %9 {offsets = [0, 56], sizes = [8, 8], strides = [1, 1]} : vector<8x64xbf16> to vector<8x8xbf16>
    %cst_25 = arith.constant dense<0.000000e+00> : vector<8x8xf32>
    %64 = tpu.matmul %61, %62, %cst_25 {dimension_numbers = #tpu.dot_dimension_numbers<[1], [1], [0], [0], [0, 0, 1, 0], [], []>} : vector<8x8xbf16>, vector<8x8xbf16>, vector<8x8xf32> -> vector<8x8xf32>
    %cst_26 = arith.constant dense<0xFF800000> : vector<8xf32>
    %65 = vector.multi_reduction <maximumf>, %64, %cst_26 [1] : vector<8x8xf32> to vector<8xf32>
    %66 = vector.shape_cast %65 : vector<8xf32> to vector<8x1xf32>
    %67 = vector.broadcast %66 : vector<8x1xf32> to vector<8x8xf32>
    %68 = arith.subf %64, %67 : vector<8x8xf32>
    %69 = math.exp %68 : vector<8x8xf32>
    %cst_27 = arith.constant dense<0.000000e+00> : vector<8xf32>
    %70 = vector.multi_reduction <add>, %69, %cst_27 [1] : vector<8x8xf32> to vector<8xf32>
    %71 = vector.shape_cast %70 : vector<8xf32> to vector<8x1xf32>
    %72 = arith.truncf %69 : vector<8x8xf32> to vector<8x8xbf16>
    %cst_28 = arith.constant dense<0.000000e+00> : vector<8x8xf32>
    %73 = tpu.matmul %72, %63, %cst_28 {dimension_numbers = #tpu.dot_dimension_numbers<[1], [0], [0], [1], [0, 0, 1, 1], [], []>} : vector<8x8xbf16>, vector<8x8xbf16>, vector<8x8xf32> -> vector<8x8xf32>
    %74 = tpu.reciprocal %71 {approx = true} : vector<8x1xf32> -> vector<8x1xf32>
    %75 = vector.broadcast %74 : vector<8x1xf32> to vector<8x8xf32>
    %76 = arith.mulf %73, %75 : vector<8x8xf32>
    %c0_29 = arith.constant 0 : index
    %c24 = arith.constant 24 : index
    %77 = vector.load %arg9[%c0_29, %c24] : memref<8x32xf32, #tpu.memory_space<vmem>>, vector<8x8xf32>
    tpu.vector_store %arg9[%c0_29, %c24], %76 {strides = array<i32>} : memref<8x32xf32, #tpu.memory_space<vmem>>, vector<8x8xf32>,
    %c0_30 = arith.constant 0 : index
    %c0_31 = arith.constant 0 : index
    %78 = vector.load %arg9[%c0_30, %c0_31] : memref<8x32xf32, #tpu.memory_space<vmem>>, vector<8x32xf32>
    %79 = arith.truncf %78 : vector<8x32xf32> to vector<8x32xbf16>
    %c0_32 = arith.constant 0 : index
    %c0_33 = arith.constant 0 : index
    %80 = vector.load %arg6[%c0_32, %c0_33] : memref<32x32xbf16, #tpu.memory_space<vmem>>, vector<32x32xbf16>
    %cst_34 = arith.constant dense<0.000000e+00> : vector<8x32xf32>
    %81 = tpu.matmul %79, %80, %cst_34 {dimension_numbers = #tpu.dot_dimension_numbers<[1], [0], [0], [1], [0, 0, 1, 1], [], []>} : vector<8x32xbf16>, vector<32x32xbf16>, vector<8x32xf32> -> vector<8x32xf32>
    %c0_35 = arith.constant 0 : index
    %c0_36 = arith.constant 0 : index
    %82 = vector.load %arg7[%c0_35, %c0_36] : memref<1x32xf32, #tpu.memory_space<vmem>>, vector<1x32xf32>
    %83 = vector.broadcast %82 : vector<1x32xf32> to vector<8x32xf32>
    %84 = arith.addf %81, %83 : vector<8x32xf32>
    %85 = arith.truncf %84 : vector<8x32xf32> to vector<8x32xbf16>
    %c0_37 = arith.constant 0 : index
    %c0_38 = arith.constant 0 : index
    %c0_39 = arith.constant 0 : index
    %86 = vector.load %arg8[%c0_37, %c0_38, %c0_39] : memref<1x8x32xbf16, #tpu.memory_space<vmem>>, vector<1x8x32xbf16>
    %87 = vector.shape_cast %86 : vector<1x8x32xbf16> to vector<8x32xbf16>
    %88 = vector.shape_cast %85 : vector<8x32xbf16> to vector<1x8x32xbf16>
    tpu.vector_store %arg8[%c0_37, %c0_38, %c0_39], %88 {strides = array<i32>} : memref<1x8x32xbf16, #tpu.memory_space<vmem>>, vector<1x8x32xbf16>,
    return
  }
  func.func @transform_0(%arg0: i32, %arg1: i32) -> (i32, i32, i32) {
    %c0_i32 = arith.constant 0 : i32
    %c0_i32_0 = arith.constant 0 : i32
    return %arg0, %arg1, %c0_i32 : i32, i32, i32
  }
  func.func @transform_1(%arg0: i32, %arg1: i32) -> (i32, i32) {
    %c0_i32 = arith.constant 0 : i32
    %c0_i32_0 = arith.constant 0 : i32
    %c0_i32_1 = arith.constant 0 : i32
    return %c0_i32, %c0_i32_0 : i32, i32
  }
  func.func @transform_2(%arg0: i32, %arg1: i32) -> (i32, i32) {
    %c0_i32 = arith.constant 0 : i32
    %c0_i32_0 = arith.constant 0 : i32
    %c0_i32_1 = arith.constant 0 : i32
    return %c0_i32, %c0_i32_0 : i32, i32
  }
  func.func @transform_3(%arg0: i32, %arg1: i32) -> (i32, i32, i32) {
    %c0_i32 = arith.constant 0 : i32
    %c0_i32_0 = arith.constant 0 : i32
    %c0_i32_1 = arith.constant 0 : i32
    return %arg0, %c0_i32, %c0_i32_0 : i32, i32, i32
  }
  func.func @transform_4(%arg0: i32, %arg1: i32) -> (i32, i32) {
    %c0_i32 = arith.constant 0 : i32
    %c0_i32_0 = arith.constant 0 : i32
    %c0_i32_1 = arith.constant 0 : i32
    return %c0_i32, %c0_i32_0 : i32, i32
  }
  func.func @transform_5(%arg0: i32, %arg1: i32) -> (i32, i32) {
    %c0_i32 = arith.constant 0 : i32
    %c0_i32_0 = arith.constant 0 : i32
    %c0_i32_1 = arith.constant 0 : i32
    return %c0_i32, %c0_i32_0 : i32, i32
  }
  func.func @transform_6(%arg0: i32, %arg1: i32) -> (i32, i32, i32) {
    %c0_i32 = arith.constant 0 : i32
    %c0_i32_0 = arith.constant 0 : i32
    return %arg0, %arg1, %c0_i32 : i32, i32, i32
  }
}

module attributes {stable_mosaic.version = 11 : i64} {
  func.func @_bn_relu_linear_kernel(%arg0: i32, %arg1: memref<16x64xbf16, #tpu.memory_space<vmem>>, %arg2: memref<1x64xf32, #tpu.memory_space<vmem>>, %arg3: memref<1x64xf32, #tpu.memory_space<vmem>>, %arg4: memref<1x64xf32, #tpu.memory_space<vmem>>, %arg5: memref<1x64xf32, #tpu.memory_space<vmem>>, %arg6: memref<64x32xbf16, #tpu.memory_space<vmem>>, %arg7: memref<1x32xf32, #tpu.memory_space<vmem>>, %arg8: memref<16x32xf32, #tpu.memory_space<vmem>>) attributes {dimension_semantics = [#tpu.dimension_semantics<parallel>], iteration_bounds = array<i64: 1>, scalar_prefetch = 0 : i64, scratch_operands = 0 : i64, tpu.core_type = #tpu.core_type<tc>, window_params = [{transform_indices = @transform_0, window_bounds = array<i64: 16, 64>}, {pipeline_mode = #tpu.pipeline_mode<synchronous>, transform_indices = @transform_1, window_bounds = array<i64: 1, 64>}, {pipeline_mode = #tpu.pipeline_mode<synchronous>, transform_indices = @transform_2, window_bounds = array<i64: 1, 64>}, {pipeline_mode = #tpu.pipeline_mode<synchronous>, transform_indices = @transform_3, window_bounds = array<i64: 1, 64>}, {pipeline_mode = #tpu.pipeline_mode<synchronous>, transform_indices = @transform_4, window_bounds = array<i64: 1, 64>}, {pipeline_mode = #tpu.pipeline_mode<synchronous>, transform_indices = @transform_5, window_bounds = array<i64: 64, 32>}, {pipeline_mode = #tpu.pipeline_mode<synchronous>, transform_indices = @transform_6, window_bounds = array<i64: 1, 32>}, {transform_indices = @transform_7, window_bounds = array<i64: 16, 32>}]} {
    %c0 = arith.constant 0 : index
    %c0_0 = arith.constant 0 : index
    %0 = vector.load %arg4[%c0, %c0_0] : memref<1x64xf32, #tpu.memory_space<vmem>>, vector<1x64xf32>
    %c0_1 = arith.constant 0 : index
    %c0_2 = arith.constant 0 : index
    %1 = vector.load %arg3[%c0_1, %c0_2] : memref<1x64xf32, #tpu.memory_space<vmem>>, vector<1x64xf32>
    %cst = arith.constant 9.99999974E-6 : f32
    %2 = vector.broadcast %cst : f32 to vector<1x64xf32>
    %3 = arith.addf %1, %2 : vector<1x64xf32>
    %4 = math.rsqrt %3 : vector<1x64xf32>
    %5 = arith.mulf %0, %4 : vector<1x64xf32>
    %c0_3 = arith.constant 0 : index
    %c0_4 = arith.constant 0 : index
    %6 = vector.load %arg5[%c0_3, %c0_4] : memref<1x64xf32, #tpu.memory_space<vmem>>, vector<1x64xf32>
    %c0_5 = arith.constant 0 : index
    %c0_6 = arith.constant 0 : index
    %7 = vector.load %arg2[%c0_5, %c0_6] : memref<1x64xf32, #tpu.memory_space<vmem>>, vector<1x64xf32>
    %8 = arith.mulf %7, %5 : vector<1x64xf32>
    %9 = arith.subf %6, %8 : vector<1x64xf32>
    %c0_7 = arith.constant 0 : index
    %c0_8 = arith.constant 0 : index
    %10 = vector.load %arg1[%c0_7, %c0_8] : memref<16x64xbf16, #tpu.memory_space<vmem>>, vector<16x64xbf16>
    %11 = arith.extf %10 : vector<16x64xbf16> to vector<16x64xf32>
    %12 = vector.broadcast %5 : vector<1x64xf32> to vector<16x64xf32>
    %13 = arith.mulf %11, %12 : vector<16x64xf32>
    %14 = vector.broadcast %9 : vector<1x64xf32> to vector<16x64xf32>
    %15 = arith.addf %13, %14 : vector<16x64xf32>
    %cst_9 = arith.constant 0.000000e+00 : f32
    %16 = vector.broadcast %cst_9 : f32 to vector<16x64xf32>
    %17 = arith.maximumf %15, %16 : vector<16x64xf32>
    %18 = arith.truncf %17 : vector<16x64xf32> to vector<16x64xbf16>
    %c0_10 = arith.constant 0 : index
    %c0_11 = arith.constant 0 : index
    %19 = vector.load %arg6[%c0_10, %c0_11] : memref<64x32xbf16, #tpu.memory_space<vmem>>, vector<64x32xbf16>
    %cst_12 = arith.constant dense<0.000000e+00> : vector<16x32xf32>
    %20 = tpu.matmul %18, %19, %cst_12 {dimension_numbers = #tpu.dot_dimension_numbers<[1], [0], [0], [1], [0, 0, 1, 1], [], []>} : vector<16x64xbf16>, vector<64x32xbf16>, vector<16x32xf32> -> vector<16x32xf32>
    %c0_13 = arith.constant 0 : index
    %c0_14 = arith.constant 0 : index
    %21 = vector.load %arg7[%c0_13, %c0_14] : memref<1x32xf32, #tpu.memory_space<vmem>>, vector<1x32xf32>
    %22 = vector.broadcast %21 : vector<1x32xf32> to vector<16x32xf32>
    %23 = arith.addf %20, %22 : vector<16x32xf32>
    %c0_15 = arith.constant 0 : index
    %c0_16 = arith.constant 0 : index
    %24 = vector.load %arg8[%c0_15, %c0_16] : memref<16x32xf32, #tpu.memory_space<vmem>>, vector<16x32xf32>
    tpu.vector_store %arg8[%c0_15, %c0_16], %23 {strides = array<i32>} : memref<16x32xf32, #tpu.memory_space<vmem>>, vector<16x32xf32>,
    return
  }
  func.func @transform_0(%arg0: i32) -> (i32, i32) {
    %c0_i32 = arith.constant 0 : i32
    %c0_i32_0 = arith.constant 0 : i32
    return %arg0, %c0_i32 : i32, i32
  }
  func.func @transform_1(%arg0: i32) -> (i32, i32) {
    %c0_i32 = arith.constant 0 : i32
    %c0_i32_0 = arith.constant 0 : i32
    %c0_i32_1 = arith.constant 0 : i32
    return %c0_i32, %c0_i32_0 : i32, i32
  }
  func.func @transform_2(%arg0: i32) -> (i32, i32) {
    %c0_i32 = arith.constant 0 : i32
    %c0_i32_0 = arith.constant 0 : i32
    %c0_i32_1 = arith.constant 0 : i32
    return %c0_i32, %c0_i32_0 : i32, i32
  }
  func.func @transform_3(%arg0: i32) -> (i32, i32) {
    %c0_i32 = arith.constant 0 : i32
    %c0_i32_0 = arith.constant 0 : i32
    %c0_i32_1 = arith.constant 0 : i32
    return %c0_i32, %c0_i32_0 : i32, i32
  }
  func.func @transform_4(%arg0: i32) -> (i32, i32) {
    %c0_i32 = arith.constant 0 : i32
    %c0_i32_0 = arith.constant 0 : i32
    %c0_i32_1 = arith.constant 0 : i32
    return %c0_i32, %c0_i32_0 : i32, i32
  }
  func.func @transform_5(%arg0: i32) -> (i32, i32) {
    %c0_i32 = arith.constant 0 : i32
    %c0_i32_0 = arith.constant 0 : i32
    %c0_i32_1 = arith.constant 0 : i32
    return %c0_i32, %c0_i32_0 : i32, i32
  }
  func.func @transform_6(%arg0: i32) -> (i32, i32) {
    %c0_i32 = arith.constant 0 : i32
    %c0_i32_0 = arith.constant 0 : i32
    %c0_i32_1 = arith.constant 0 : i32
    return %c0_i32, %c0_i32_0 : i32, i32
  }
  func.func @transform_7(%arg0: i32) -> (i32, i32) {
    %c0_i32 = arith.constant 0 : i32
    %c0_i32_0 = arith.constant 0 : i32
    return %arg0, %c0_i32 : i32, i32
  }
}

module attributes {stable_mosaic.version = 11 : i64} {
  func.func @_cat_linear_bnstats_kernel(%arg0: i32, %arg1: memref<16x32xbf16, #tpu.memory_space<vmem>>, %arg2: memref<16x32xbf16, #tpu.memory_space<vmem>>, %arg3: memref<32x64xbf16, #tpu.memory_space<vmem>>, %arg4: memref<32x64xbf16, #tpu.memory_space<vmem>>, %arg5: memref<1x64xf32, #tpu.memory_space<vmem>>, %arg6: memref<16x64xbf16, #tpu.memory_space<vmem>>, %arg7: memref<1x1x64xf32, #tpu.memory_space<vmem>>, %arg8: memref<1x1x64xf32, #tpu.memory_space<vmem>>) attributes {dimension_semantics = [#tpu.dimension_semantics<parallel>], iteration_bounds = array<i64: 1>, scalar_prefetch = 0 : i64, scratch_operands = 0 : i64, tpu.core_type = #tpu.core_type<tc>, window_params = [{transform_indices = @transform_0, window_bounds = array<i64: 16, 32>}, {transform_indices = @transform_1, window_bounds = array<i64: 16, 32>}, {pipeline_mode = #tpu.pipeline_mode<synchronous>, transform_indices = @transform_2, window_bounds = array<i64: 32, 64>}, {pipeline_mode = #tpu.pipeline_mode<synchronous>, transform_indices = @transform_3, window_bounds = array<i64: 32, 64>}, {pipeline_mode = #tpu.pipeline_mode<synchronous>, transform_indices = @transform_4, window_bounds = array<i64: 1, 64>}, {transform_indices = @transform_5, window_bounds = array<i64: 16, 64>}, {transform_indices = @transform_6, window_bounds = array<i64: 1, 1, 64>}, {transform_indices = @transform_7, window_bounds = array<i64: 1, 1, 64>}]} {
    %c0 = arith.constant 0 : index
    %c0_0 = arith.constant 0 : index
    %0 = vector.load %arg1[%c0, %c0_0] : memref<16x32xbf16, #tpu.memory_space<vmem>>, vector<16x32xbf16>
    %c0_1 = arith.constant 0 : index
    %c0_2 = arith.constant 0 : index
    %1 = vector.load %arg3[%c0_1, %c0_2] : memref<32x64xbf16, #tpu.memory_space<vmem>>, vector<32x64xbf16>
    %cst = arith.constant dense<0.000000e+00> : vector<16x64xf32>
    %2 = tpu.matmul %0, %1, %cst {dimension_numbers = #tpu.dot_dimension_numbers<[1], [0], [0], [1], [0, 0, 1, 1], [], []>} : vector<16x32xbf16>, vector<32x64xbf16>, vector<16x64xf32> -> vector<16x64xf32>
    %c0_3 = arith.constant 0 : index
    %c0_4 = arith.constant 0 : index
    %3 = vector.load %arg2[%c0_3, %c0_4] : memref<16x32xbf16, #tpu.memory_space<vmem>>, vector<16x32xbf16>
    %c0_5 = arith.constant 0 : index
    %c0_6 = arith.constant 0 : index
    %4 = vector.load %arg4[%c0_5, %c0_6] : memref<32x64xbf16, #tpu.memory_space<vmem>>, vector<32x64xbf16>
    %cst_7 = arith.constant dense<0.000000e+00> : vector<16x64xf32>
    %5 = tpu.matmul %3, %4, %cst_7 {dimension_numbers = #tpu.dot_dimension_numbers<[1], [0], [0], [1], [0, 0, 1, 1], [], []>} : vector<16x32xbf16>, vector<32x64xbf16>, vector<16x64xf32> -> vector<16x64xf32>
    %6 = arith.addf %2, %5 : vector<16x64xf32>
    %c0_8 = arith.constant 0 : index
    %c0_9 = arith.constant 0 : index
    %7 = vector.load %arg5[%c0_8, %c0_9] : memref<1x64xf32, #tpu.memory_space<vmem>>, vector<1x64xf32>
    %8 = vector.broadcast %7 : vector<1x64xf32> to vector<16x64xf32>
    %9 = arith.addf %6, %8 : vector<16x64xf32>
    %10 = arith.truncf %9 : vector<16x64xf32> to vector<16x64xbf16>
    %c0_10 = arith.constant 0 : index
    %c0_11 = arith.constant 0 : index
    %11 = vector.load %arg6[%c0_10, %c0_11] : memref<16x64xbf16, #tpu.memory_space<vmem>>, vector<16x64xbf16>
    tpu.vector_store %arg6[%c0_10, %c0_11], %10 {strides = array<i32>} : memref<16x64xbf16, #tpu.memory_space<vmem>>, vector<16x64xbf16>,
    %cst_12 = arith.constant dense<0.000000e+00> : vector<64xf32>
    %12 = vector.multi_reduction <add>, %9, %cst_12 [0] : vector<16x64xf32> to vector<64xf32>
    %13 = vector.shape_cast %12 : vector<64xf32> to vector<1x64xf32>
    %c0_13 = arith.constant 0 : index
    %c0_14 = arith.constant 0 : index
    %c0_15 = arith.constant 0 : index
    %14 = vector.load %arg7[%c0_13, %c0_14, %c0_15] : memref<1x1x64xf32, #tpu.memory_space<vmem>>, vector<1x1x64xf32>
    %15 = vector.shape_cast %14 : vector<1x1x64xf32> to vector<1x64xf32>
    %16 = vector.shape_cast %13 : vector<1x64xf32> to vector<1x1x64xf32>
    tpu.vector_store %arg7[%c0_13, %c0_14, %c0_15], %16 {strides = array<i32>} : memref<1x1x64xf32, #tpu.memory_space<vmem>>, vector<1x1x64xf32>,
    %17 = arith.mulf %9, %9 : vector<16x64xf32>
    %cst_16 = arith.constant dense<0.000000e+00> : vector<64xf32>
    %18 = vector.multi_reduction <add>, %17, %cst_16 [0] : vector<16x64xf32> to vector<64xf32>
    %19 = vector.shape_cast %18 : vector<64xf32> to vector<1x64xf32>
    %c0_17 = arith.constant 0 : index
    %c0_18 = arith.constant 0 : index
    %c0_19 = arith.constant 0 : index
    %20 = vector.load %arg8[%c0_17, %c0_18, %c0_19] : memref<1x1x64xf32, #tpu.memory_space<vmem>>, vector<1x1x64xf32>
    %21 = vector.shape_cast %20 : vector<1x1x64xf32> to vector<1x64xf32>
    %22 = vector.shape_cast %19 : vector<1x64xf32> to vector<1x1x64xf32>
    tpu.vector_store %arg8[%c0_17, %c0_18, %c0_19], %22 {strides = array<i32>} : memref<1x1x64xf32, #tpu.memory_space<vmem>>, vector<1x1x64xf32>,
    return
  }
  func.func @transform_0(%arg0: i32) -> (i32, i32) {
    %c0_i32 = arith.constant 0 : i32
    %c0_i32_0 = arith.constant 0 : i32
    return %arg0, %c0_i32 : i32, i32
  }
  func.func @transform_1(%arg0: i32) -> (i32, i32) {
    %c0_i32 = arith.constant 0 : i32
    %c0_i32_0 = arith.constant 0 : i32
    return %arg0, %c0_i32 : i32, i32
  }
  func.func @transform_2(%arg0: i32) -> (i32, i32) {
    %c0_i32 = arith.constant 0 : i32
    %c0_i32_0 = arith.constant 0 : i32
    %c0_i32_1 = arith.constant 0 : i32
    return %c0_i32, %c0_i32_0 : i32, i32
  }
  func.func @transform_3(%arg0: i32) -> (i32, i32) {
    %c0_i32 = arith.constant 0 : i32
    %c0_i32_0 = arith.constant 0 : i32
    %c0_i32_1 = arith.constant 0 : i32
    return %c0_i32, %c0_i32_0 : i32, i32
  }
  func.func @transform_4(%arg0: i32) -> (i32, i32) {
    %c0_i32 = arith.constant 0 : i32
    %c0_i32_0 = arith.constant 0 : i32
    %c0_i32_1 = arith.constant 0 : i32
    return %c0_i32, %c0_i32_0 : i32, i32
  }
  func.func @transform_5(%arg0: i32) -> (i32, i32) {
    %c0_i32 = arith.constant 0 : i32
    %c0_i32_0 = arith.constant 0 : i32
    return %arg0, %c0_i32 : i32, i32
  }
  func.func @transform_6(%arg0: i32) -> (i32, i32, i32) {
    %c0_i32 = arith.constant 0 : i32
    %c0_i32_0 = arith.constant 0 : i32
    %c0_i32_1 = arith.constant 0 : i32
    return %arg0, %c0_i32, %c0_i32_0 : i32, i32, i32
  }
  func.func @transform_7(%arg0: i32) -> (i32, i32, i32) {
    %c0_i32 = arith.constant 0 : i32
    %c0_i32_0 = arith.constant 0 : i32
    %c0_i32_1 = arith.constant 0 : i32
    return %arg0, %c0_i32, %c0_i32_0 : i32, i32, i32
  }
}

</mosaic_0001>

<llo_original>
// kernel: attentional_propagation_forward.4
$region0: #{attentional_propagation_forward.4}
  #allocation0 [shape = 'u32[]', space=smem, size = 0x4, offset = 0x4, fixed_abs, tag = 'smem constant byte address 0x4 - core index']
  #allocation1 [shape = 'u32[72,128]{1,0:T(1,128)}', space=vmem, size = 0x9000, scoped, tag = 'internal scratch']
  %s0 = inlined_call_operand.vmem [shape: bf16[16,32], index: 0, kind: input, shape index: {}]
  %s1 = inlined_call_operand.vmem [shape: bf16[32,64], index: 1, kind: input, shape index: {}]
  %s2 = inlined_call_operand.vmem [shape: f32[1,64], index: 2, kind: input, shape index: {}]
  %s3 = inlined_call_operand.vmem [shape: bf16[16,64], index: 3, kind: output, shape index: {}]
  %s4 = sld [smem:[#allocation0]]
  $region22: #{attentional_propagation_forward.4} parent=0
    _
  %s6 = ssub.s32 1, %s4
  %s7 = scalar_select 0, %s6, %s4
  // Predicated region
  $region2: #{attentional_propagation_forward.4} parent=0 // pred_check
    _
  $region3: #{attentional_propagation_forward.4} parent=0 // pred_check_branch
    %9 = sbr.rel (0) target = $region5
  $region4: #{attentional_propagation_forward.4} parent=0 // pred_region
    _
  $region5: #{attentional_propagation_forward.4} parent=0 // pred_fallthru
    _
  // Predicated region
  $region6: #{attentional_propagation_forward.4} parent=0 // pred_check
    _
  $region7: #{attentional_propagation_forward.4} parent=0 // pred_check_branch
    %11 = sbr.rel (0) target = $region9
  $region8: #{attentional_propagation_forward.4} parent=0 // pred_region
    _
  $region9: #{attentional_propagation_forward.4} parent=0 // pred_fallthru
    _
  // Predicated region
  $region10: #{attentional_propagation_forward.4} parent=0 // pred_check
    _
  $region11: #{attentional_propagation_forward.4} parent=0 // pred_check_branch
    %13 = sbr.rel (0) target = $region13
  $region12: #{attentional_propagation_forward.4} parent=0 // pred_region
    _
  $region13: #{attentional_propagation_forward.4} parent=0 // pred_fallthru
    _
  %v15 = vld [vmem:[%s0] sm:$0xf]
  %v16 = vld [vmem:[%s0 + $0x4] sm:$0xf]
  %v17 = vld [vmem:[%s1] sm:$0xf]
  %v18 = vld [vmem:[%s1 + $0x4] sm:$0xf]
  %v19 = vld [vmem:[%s1 + $0x8] sm:$0xf]
  %v20 = vld [vmem:[%s1 + $0xc] sm:$0xf]
  %v21 = vld [vmem:[%s2] sm:$0x1]
  %v23 = vperm.slane %v21, 0
  %v27 = vunpack.c.l.b16 %v15
  %v28 = vunpack.c.l.b16 %v16
  %v29 = vpack.c.b16 %v28, %v27
  %v34 = vunpack.c.l.b16 %v17
  %v35 = vunpack.c.l.b16 %v18
  %v36 = vunpack.c.l.b16 %v19
  %v37 = vunpack.c.l.b16 %v20
  %v38 = vpack.c.b16 %v35, %v34
  %v39 = vpack.c.b16 %v37, %v36
  %vm42 = vcmask 261120
  %v44 = vsel %vm42, %v29, 0
  %46 = vmatpush.bf16.msra.mxu0 0
  %47 = vmatpush.bf16.msra.mxu0 0
  %48 = vmatpush.bf16.msra.mxu0 0
  %49 = vmatpush.bf16.msra.mxu0 0
  %50 = vmatpush.bf16.msra.mxu0 0
  %51 = vmatpush.bf16.msra.mxu0 0
  %52 = vmatpush.bf16.msra.mxu0 %v39
  %53 = vmatpush.bf16.msra.mxu0 %v38
  %54 = vmatmul.bf16.gmra.mxu0 %v44
  %v55 = vpop.f32.mrf.mxu0
  %v56 = vadd.f32 %v23, %v55
  %v57 = vpop.f32.mrf.mxu0
  %v58 = vadd.f32 %v23, %v57
  %59 = vdwg.mxu0
  %v60 = vpack.c.bf16 %v56, %v56
  %v61 = vpack.c.bf16 %v58, %v58
  %vm62 = vcmask 519168
  %63 = vst.msk [vmem:[%s3] sm:$0xf] %vm62, %v60
  %64 = vst.msk [vmem:[%s3 + $0x4] sm:$0xf] %vm62, %v61
  // Predicated region
  $region14: #{attentional_propagation_forward.4} parent=0 // pred_check
    _
  $region15: #{attentional_propagation_forward.4} parent=0 // pred_check_branch
    %66 = sbr.rel (0) target = $region17
  $region16: #{attentional_propagation_forward.4} parent=0 // pred_region
    _
  $region17: #{attentional_propagation_forward.4} parent=0 // pred_fallthru
    _
  // Predicated region
  $region18: #{attentional_propagation_forward.4} parent=0 // pred_check
    _
  $region19: #{attentional_propagation_forward.4} parent=0 // pred_check_branch
    %68 = sbr.rel (0) target = $region21
  $region20: #{attentional_propagation_forward.4} parent=0 // pred_region
    _
  $region21: #{attentional_propagation_forward.4} parent=0 // pred_fallthru
    _

// kernel: attentional_propagation_forward.7
$region0: #{attentional_propagation_forward.7}
  #allocation0 [shape = 'u32[]', space=smem, size = 0x4, offset = 0x4, fixed_abs, tag = 'smem constant byte address 0x4 - core index']
  #allocation1 [shape = 'u32[72,128]{1,0:T(1,128)}', space=vmem, size = 0x9000, scoped, tag = 'internal scratch']
  %s0 = inlined_call_operand.vmem [shape: bf16[16,64], index: 0, kind: input, shape index: {}]
  %s1 = inlined_call_operand.vmem [shape: f32[1,64], index: 1, kind: input, shape index: {}]
  %s2 = inlined_call_operand.vmem [shape: f32[1,64], index: 2, kind: input, shape index: {}]
  %s3 = inlined_call_operand.vmem [shape: f32[1,64], index: 3, kind: input, shape index: {}]
  %s4 = inlined_call_operand.vmem [shape: f32[1,64], index: 4, kind: input, shape index: {}]
  %s5 = inlined_call_operand.vmem [shape: bf16[64,32], index: 5, kind: input, shape index: {}]
  %s6 = inlined_call_operand.vmem [shape: f32[1,32], index: 6, kind: input, shape index: {}]
  %s7 = inlined_call_operand.hbm [shape: f32[16,32], index: 7, kind: output, shape index: {}]
  %s8 = sld [smem:[#allocation0]]
  $region38: #{attentional_propagation_forward.7} parent=0
    _
  %s10 = ssub.s32 1, %s8
  %s11 = scalar_select 0, %s10, %s8
  $region1: #{attentional_propagation_forward.7} parent=0
    #allocation2 [shape = 'u8[8192]{0}', space=vmem, size = 0x2000, scoped, tag = 'output window, operand 0, single buffered']
    #allocation3 [shape = 's32[1]{0}', space=sflag, size = 0x4, scoped, tag = 'scoped memory for attentional_propagation_forward.7']
    %12 = vsyncpa [#allocation3], 0
    // Predicated region
    $region2: #{attentional_propagation_forward.7} parent=1 // pred_check
      _
    $region3: #{attentional_propagation_forward.7} parent=1 // pred_check_branch
      %14 = sbr.rel (0) target = $region5
    $region4: #{attentional_propagation_forward.7} parent=1 // pred_region
      _
    $region5: #{attentional_propagation_forward.7} parent=1 // pred_fallthru
      _
    // Predicated region
    $region6: #{attentional_propagation_forward.7} parent=1 // pred_check
      _
    $region7: #{attentional_propagation_forward.7} parent=1 // pred_check_branch
      %16 = sbr.rel (0) target = $region9
    $region8: #{attentional_propagation_forward.7} parent=1 // pred_region
      _
    $region9: #{attentional_propagation_forward.7} parent=1 // pred_fallthru
      _
    // Predicated region
    $region10: #{attentional_propagation_forward.7} parent=1 // pred_check
      _
    $region11: #{attentional_propagation_forward.7} parent=1 // pred_check_branch
      %18 = sbr.rel (0) target = $region13
    $region12: #{attentional_propagation_forward.7} parent=1 // pred_region
      _
    $region13: #{attentional_propagation_forward.7} parent=1 // pred_fallthru
      _
    // Predicated region
    $region14: #{attentional_propagation_forward.7} parent=1 // pred_check
      _
    $region15: #{attentional_propagation_forward.7} parent=1 // pred_check_branch
      %20 = sbr.rel (0) target = $region17
    $region16: #{attentional_propagation_forward.7} parent=1 // pred_region
      _
    $region17: #{attentional_propagation_forward.7} parent=1 // pred_fallthru
      _
    // Predicated region
    $region18: #{attentional_propagation_forward.7} parent=1 // pred_check
      _
    $region19: #{attentional_propagation_forward.7} parent=1 // pred_check_branch
      %22 = sbr.rel (0) target = $region21
    $region20: #{attentional_propagation_forward.7} parent=1 // pred_region
      _
    $region21: #{attentional_propagation_forward.7} parent=1 // pred_fallthru
      _
    // Predicated region
    $region22: #{attentional_propagation_forward.7} parent=1 // pred_check
      _
    $region23: #{attentional_propagation_forward.7} parent=1 // pred_check_branch
      %24 = sbr.rel (0) target = $region25
    $region24: #{attentional_propagation_forward.7} parent=1 // pred_region
      _
    $region25: #{attentional_propagation_forward.7} parent=1 // pred_fallthru
      _
    // Predicated region
    $region26: #{attentional_propagation_forward.7} parent=1 // pred_check
      _
    $region27: #{attentional_propagation_forward.7} parent=1 // pred_check_branch
      %26 = sbr.rel (0) target = $region29
    $region28: #{attentional_propagation_forward.7} parent=1 // pred_region
      _
    $region29: #{attentional_propagation_forward.7} parent=1 // pred_fallthru
      _
    %v28 = vld [vmem:[%s3] sm:$0x1]
    %v29 = vld [vmem:[%s2] sm:$0x1]
    %v30 = vadd.f32 %v29, 1e-05
    %v31 = vrsqrt.pop %v30
    %v32 = vmul.f32 %v31, %v30
    %v33 = vmul.f32 %v32, %v31
    %v34 = vmul.f32 0.5, %v33
    %v35 = vsub.f32 1.5, %v34
    %v36 = vmul.f32 %v31, %v35
    %vm37 = vweird.f32 %v30
    %vm38 = vweird.f32 %v31
    %vm39 = vmor %vm37, %vm38
    %v40 = vsel %vm39, %v31, %v36
    %v41 = vmul.f32 %v28, %v40
    %v42 = vld [vmem:[%s4] sm:$0x1]
    %v43 = vld [vmem:[%s1] sm:$0x1]
    %v44 = vmul.f32 %v43, %v41
    %v45 = vsub.f32 %v42, %v44
    %v46 = vld [vmem:[%s0] sm:$0xf]
    %v47 = vld [vmem:[%s0 + $0x4] sm:$0xf]
    %v48 = vunpack.c.l.bf16 %v46
    %v49 = vunpack.c.l.bf16 %v47
    %v51 = vperm.slane %v41, 0
    %v53 = vmul.f32 %v48, %v51
    %v54 = vmul.f32 %v49, %v51
    %v56 = vperm.slane %v45, 0
    %v58 = vadd.f32 %v53, %v56
    %v59 = vadd.f32 %v54, %v56
    %v60 = vmax.f32 %v58, 0.0
    %v61 = vmax.f32 %v59, 0.0
    %v62 = vpack.c.bf16 %v61, %v60
    %v63 = vld [vmem:[%s5] sm:$0xf]
    %v64 = vld [vmem:[%s5 + $0x4] sm:$0xf]
    %v65 = vld [vmem:[%s5 + $0x8] sm:$0xf]
    %v66 = vld [vmem:[%s5 + $0xc] sm:$0xf]
    %v67 = vld [vmem:[%s5 + $0x10] sm:$0xf]
    %v68 = vld [vmem:[%s5 + $0x14] sm:$0xf]
    %v69 = vld [vmem:[%s5 + $0x18] sm:$0xf]
    %v70 = vld [vmem:[%s5 + $0x1c] sm:$0xf]
    %v71 = vld [vmem:[%s6] sm:$0x1]
    %v73 = vperm.slane %v71, 0
    %v83 = vunpack.c.l.b16 %v63
    %v84 = vunpack.c.l.b16 %v64
    %v85 = vunpack.c.l.b16 %v65
    %v86 = vunpack.c.l.b16 %v66
    %v87 = vunpack.c.l.b16 %v67
    %v88 = vunpack.c.l.b16 %v68
    %v89 = vunpack.c.l.b16 %v69
    %v90 = vunpack.c.l.b16 %v70
    %v91 = vpack.c.b16 %v84, %v83
    %v92 = vpack.c.b16 %v86, %v85
    %v93 = vpack.c.b16 %v88, %v87
    %v94 = vpack.c.b16 %v90, %v89
    %vm99 = vcmask 523264
    %v101 = vsel %vm99, %v62, 0
    %103 = vmatpush.bf16.msra.mxu0 0
    %104 = vmatpush.bf16.msra.mxu0 0
    %105 = vmatpush.bf16.msra.mxu0 0
    %106 = vmatpush.bf16.msra.mxu0 0
    %107 = vmatpush.bf16.msra.mxu0 %v94
    %108 = vmatpush.bf16.msra.mxu0 %v93
    %109 = vmatpush.bf16.msra.mxu0 %v92
    %110 = vmatpush.bf16.msra.mxu0 %v91
    %111 = vmatmul.bf16.gmra.mxu0 %v101
    %v112 = vpop.f32.mrf.mxu0
    %v113 = vadd.f32 %v73, %v112
    %v114 = vpop.f32.mrf.mxu0
    %v115 = vadd.f32 %v73, %v114
    %116 = vdwg.mxu0
    %vm117 = vcmask 261120
    %118 = vst.msk [vmem:[#allocation2] sm:$0xff] %vm117, %v113
    %119 = vst.msk [vmem:[#allocation2 + $0x8] sm:$0xff] %vm117, %v115
    // Predicated region
    $region30: #{attentional_propagation_forward.7} parent=1 // pred_check
      _
    $region31: #{attentional_propagation_forward.7} parent=1 // pred_check_branch
      %121 = sbr.rel (0) target = $region33
    $region32: #{attentional_propagation_forward.7} parent=1 // pred_region
      %123 = vsyncadd [#allocation3], 0
      %s124 = sshll.u32 [#allocation2], 4
      %s125 = int_to_ptr.vmem [resolvable:$true] %s124
      %s126 = sshll.u32 %s7, 4
      %s127 = int_to_ptr.hbm [resolvable:$true] %s126
      %132 = dma.vmem_to_hbm [thread:$0]  %s125, 256, %s127, [#allocation3], 128, 128, 8
    $region33: #{attentional_propagation_forward.7} parent=1 // pred_fallthru
      _
    // Predicated region
    $region34: #{attentional_propagation_forward.7} parent=1 // pred_check
      _
    $region35: #{attentional_propagation_forward.7} parent=1 // pred_check_branch
      %134 = sbr.rel (0) target = $region37
    $region36: #{attentional_propagation_forward.7} parent=1 // pred_region
      %136 = dma.done [#allocation3], 256
    $region37: #{attentional_propagation_forward.7} parent=1 // pred_fallthru
      _
    %137 = vsyncpa [#allocation3], 1

// kernel: attentional_propagation_forward.5
$region0: #{attentional_propagation_forward.5}
  #allocation0 [shape = 'u32[]', space=smem, size = 0x4, offset = 0x4, fixed_abs, tag = 'smem constant byte address 0x4 - core index']
  #allocation1 [shape = 'u32[72,128]{1,0:T(1,128)}', space=vmem, size = 0x9000, scoped, tag = 'internal scratch']
  #allocation2 [shape = 'f32[8,32]{1,0:T(8,128)}', space=vmem, size = 0x1000, scoped, tag = 'scratch operand']
  %s0 = inlined_call_operand.vmem [shape: bf16[2,8,32], index: 0, kind: input, shape index: {}]
  %s1 = inlined_call_operand.vmem [shape: bf16[32,32], index: 1, kind: input, shape index: {}]
  %s2 = inlined_call_operand.vmem [shape: f32[1,32], index: 2, kind: input, shape index: {}]
  %s3 = inlined_call_operand.vmem [shape: bf16[2,8,64], index: 3, kind: input, shape index: {}]
  %s4 = inlined_call_operand.vmem [shape: bf16[32,32], index: 4, kind: input, shape index: {}]
  %s5 = inlined_call_operand.vmem [shape: f32[1,32], index: 5, kind: input, shape index: {}]
  %s6 = inlined_call_operand.vmem [shape: bf16[2,8,32], index: 6, kind: output, shape index: {}]
  %s7 = sld [smem:[#allocation0]]
  $region57: #{attentional_propagation_forward.5} parent=0
    _
  %s9 = ssub.s32 1, %s7
  %s10 = scalar_select 0, %s9, %s7
  loop: start=0, step=1, limit=4
  $region2: #{attentional_propagation_forward.5} parent=0 // loop_pre_header
    _
  $region3: #{attentional_propagation_forward.5} parent=0 // loop_header
    %s12 = sphi 0, %s16
    %p13 = scmp.ge.s32.totalorder %s12, 4
    %s19 = sphi 0, %s31
    %s20 = sphi 0, %s27
    %s21 = sphi 0, %s19
    %s22 = sphi 0, %s20
    %s23 = sphi 0, %s21
    %s24 = sphi 0, %s22
    %s36 = sphi 0, %s38
    %s39 = sphi 0, %s36
    %s40 = sphi 0, %s39
    %s56 = sphi 0, %s40
    %s60 = sphi 0, %s60
    %s62 = sphi 0, %s60
    %s63 = sphi 0, %s62
    %s77 = sphi 0, %s63
    %s81 = sphi 0, %s81
    %s83 = sphi 0, %s81
    %s84 = sphi 0, %s83
    %s98 = sphi 0, %s84
    %s104 = sphi 0, %s106
    %s107 = sphi 0, %s104
    %s108 = sphi 0, %s107
    %s124 = sphi 0, %s108
    %s128 = sphi 0, %s128
    %s130 = sphi 0, %s128
    %s131 = sphi 0, %s130
    %s145 = sphi 0, %s131
    %s149 = sphi 0, %s149
    %s151 = sphi 0, %s149
    %s152 = sphi 0, %s151
    %s166 = sphi 0, %s152
    %s174 = sphi 0, %s176
    %s177 = sphi 0, %s174
    %s178 = sphi 0, %s177
    %s194 = sphi 0, %s178
  $region4: #{attentional_propagation_forward.5} parent=0 // loop_header_branch
    %15 = sbr.rel (%p13) target = $region8
  $region5: #{attentional_propagation_forward.5} parent=0 // loop_body
    %s17 = ssub.s32 %s12, 1
    %s18 = ssub.s32 %s12, 2
    %s25 = sadd.s32 1, %s20
    %p26 = scmp.ge.s32.totalorder %s25, 1
    %s27 = scalar_select %p26, 0, %s25
    %s28 = sadd.s32 1, %s19
    %s29 = scalar_select %p26, %s28, %s19
    %p30 = scmp.ge.s32.totalorder %s29, 2
    %s31 = scalar_select %p30, 0, %s29
    %s32 = ssub.s32 %s19, %s31
    %s33 = ssub.s32 %s20, %s27
    %s34 = sor.u32 %s32, %s33
    %p35 = scmp.eq.s32.totalorder %s34, 0
    %s37 = sadd.s32 %s36, 1
    %s38 = scalar_select %p35, %s36, %s37
    %p41 = pneg %p35
    %p42 = scmp.eq.s32.totalorder %s12, 1
    %p43 = por %p41, %p42
    %p44 = scmp.ne.s32.totalorder %s36, %s39
    %p45 = scmp.eq.s32.totalorder %s12, 0
    %p46 = por %p44, %p45
    %p47 = scmp.ne.s32.totalorder %s36, %s39
    %p48 = scmp.eq.s32.totalorder %s17, 1
    %p49 = por %p47, %p48
    %p50 = scmp.ne.s32.totalorder %s39, %s40
    %p51 = scmp.eq.s32.totalorder %s17, 0
    %p52 = por %p50, %p51
    %p53 = scmp.ne.s32.totalorder %s39, %s40
    %p54 = scmp.eq.s32.totalorder %s18, 1
    %p55 = por %p53, %p54
    %p57 = scmp.ne.s32.totalorder %s40, %s56
    %p58 = scmp.eq.s32.totalorder %s18, 0
    %p59 = por %p57, %p58
    %s61 = sadd.s32 %s60, 1
    %p64 = scmp.eq.s32.totalorder %s12, 1
    %p65 = scmp.ne.s32.totalorder %s60, %s62
    %p66 = scmp.eq.s32.totalorder %s12, 0
    %p67 = por %p65, %p66
    %p68 = scmp.ne.s32.totalorder %s60, %s62
    %p69 = scmp.eq.s32.totalorder %s17, 1
    %p70 = por %p68, %p69
    %p71 = scmp.ne.s32.totalorder %s62, %s63
    %p72 = scmp.eq.s32.totalorder %s17, 0
    %p73 = por %p71, %p72
    %p74 = scmp.ne.s32.totalorder %s62, %s63
    %p75 = scmp.eq.s32.totalorder %s18, 1
    %p76 = por %p74, %p75
    %p78 = scmp.ne.s32.totalorder %s63, %s77
    %p79 = scmp.eq.s32.totalorder %s18, 0
    %p80 = por %p78, %p79
    %s82 = sadd.s32 %s81, 1
    %p85 = scmp.eq.s32.totalorder %s12, 1
    %p86 = scmp.ne.s32.totalorder %s81, %s83
    %p87 = scmp.eq.s32.totalorder %s12, 0
    %p88 = por %p86, %p87
    %p89 = scmp.ne.s32.totalorder %s81, %s83
    %p90 = scmp.eq.s32.totalorder %s17, 1
    %p91 = por %p89, %p90
    %p92 = scmp.ne.s32.totalorder %s83, %s84
    %p93 = scmp.eq.s32.totalorder %s17, 0
    %p94 = por %p92, %p93
    %p95 = scmp.ne.s32.totalorder %s83, %s84
    %p96 = scmp.eq.s32.totalorder %s18, 1
    %p97 = por %p95, %p96
    %p99 = scmp.ne.s32.totalorder %s84, %s98
    %p100 = scmp.eq.s32.totalorder %s18, 0
    %p101 = por %p99, %p100
    %s102 = ssub.s32 %s19, %s31
    %p103 = scmp.eq.s32.totalorder %s102, 0
    %s105 = sadd.s32 %s104, 1
    %s106 = scalar_select %p103, %s104, %s105
    %p109 = pneg %p103
    %p110 = scmp.eq.s32.totalorder %s12, 1
    %p111 = por %p109, %p110
    %p112 = scmp.ne.s32.totalorder %s104, %s107
    %p113 = scmp.eq.s32.totalorder %s12, 0
    %p114 = por %p112, %p113
    %p115 = scmp.ne.s32.totalorder %s104, %s107
    %p116 = scmp.eq.s32.totalorder %s17, 1
    %p117 = por %p115, %p116
    %p118 = scmp.ne.s32.totalorder %s107, %s108
    %p119 = scmp.eq.s32.totalorder %s17, 0
    %p120 = por %p118, %p119
    %p121 = scmp.ne.s32.totalorder %s107, %s108
    %p122 = scmp.eq.s32.totalorder %s18, 1
    %p123 = por %p121, %p122
    %p125 = scmp.ne.s32.totalorder %s108, %s124
    %p126 = scmp.eq.s32.totalorder %s18, 0
    %p127 = por %p125, %p126
    %s129 = sadd.s32 %s128, 1
    %p132 = scmp.eq.s32.totalorder %s12, 1
    %p133 = scmp.ne.s32.totalorder %s128, %s130
    %p134 = scmp.eq.s32.totalorder %s12, 0
    %p135 = por %p133, %p134
    %p136 = scmp.ne.s32.totalorder %s128, %s130
    %p137 = scmp.eq.s32.totalorder %s17, 1
    %p138 = por %p136, %p137
    %p139 = scmp.ne.s32.totalorder %s130, %s131
    %p140 = scmp.eq.s32.totalorder %s17, 0
    %p141 = por %p139, %p140
    %p142 = scmp.ne.s32.totalorder %s130, %s131
    %p143 = scmp.eq.s32.totalorder %s18, 1
    %p144 = por %p142, %p143
    %p146 = scmp.ne.s32.totalorder %s131, %s145
    %p147 = scmp.eq.s32.totalorder %s18, 0
    %p148 = por %p146, %p147
    %s150 = sadd.s32 %s149, 1
    %p153 = scmp.eq.s32.totalorder %s12, 1
    %p154 = scmp.ne.s32.totalorder %s149, %s151
    %p155 = scmp.eq.s32.totalorder %s12, 0
    %p156 = por %p154, %p155
    %p157 = scmp.ne.s32.totalorder %s149, %s151
    %p158 = scmp.eq.s32.totalorder %s17, 1
    %p159 = por %p157, %p158
    %p160 = scmp.ne.s32.totalorder %s151, %s152
    %p161 = scmp.eq.s32.totalorder %s17, 0
    %p162 = por %p160, %p161
    %p163 = scmp.ne.s32.totalorder %s151, %s152
    %p164 = scmp.eq.s32.totalorder %s18, 1
    %p165 = por %p163, %p164
    %p167 = scmp.ne.s32.totalorder %s152, %s166
    %p168 = scmp.eq.s32.totalorder %s18, 0
    %p169 = por %p167, %p168
    %s170 = ssub.s32 %s19, %s31
    %s171 = ssub.s32 %s20, %s27
    %s172 = sor.u32 %s170, %s171
    %p173 = scmp.eq.s32.totalorder %s172, 0
    %s175 = sadd.s32 %s174, 1
    %s176 = scalar_select %p173, %s174, %s175
    %p179 = pneg %p173
    %p180 = scmp.eq.s32.totalorder %s12, 1
    %p181 = por %p179, %p180
    %p182 = scmp.ne.s32.totalorder %s174, %s177
    %p183 = scmp.eq.s32.totalorder %s12, 0
    %p184 = por %p182, %p183
    %p185 = scmp.ne.s32.totalorder %s174, %s177
    %p186 = scmp.eq.s32.totalorder %s17, 1
    %p187 = por %p185, %p186
    %p188 = scmp.ne.s32.totalorder %s177, %s178
    %p189 = scmp.eq.s32.totalorder %s17, 0
    %p190 = por %p188, %p189
    %p191 = scmp.ne.s32.totalorder %s177, %s178
    %p192 = scmp.eq.s32.totalorder %s18, 1
    %p193 = por %p191, %p192
    %p195 = scmp.ne.s32.totalorder %s178, %s194
    %p196 = scmp.eq.s32.totalorder %s18, 0
    %p197 = por %p195, %p196
    %p198 = scmp.le.s32.totalorder 1, %s12
    %p199 = scmp.lt.s32.totalorder %s12, 3
    %p200 = pnand %p198, %p199
    %p201 = pneg %p200
    // Predicated region
    $region9: #{attentional_propagation_forward.5} parent=5 // pred_check
      _
    $region10: #{attentional_propagation_forward.5} parent=5 // pred_check_branch
      %203 = sbr.rel (%p200) target = $region12
    $region11: #{attentional_propagation_forward.5} parent=5 // pred_region
      %s204 = ssub.s32 %s12, 1
      // Predicated region
      $region13: #{attentional_propagation_forward.5} parent=11 // pred_check
        %p205 = pneg %p73
      $region14: #{attentional_propagation_forward.5} parent=11 // pred_check_branch
        %207 = sbr.rel (%p205) target = $region16
      $region15: #{attentional_propagation_forward.5} parent=11 // pred_region
        _
      $region16: #{attentional_propagation_forward.5} parent=11 // pred_fallthru
        _
      // Predicated region
      $region17: #{attentional_propagation_forward.5} parent=11 // pred_check
        %p208 = pneg %p94
      $region18: #{attentional_propagation_forward.5} parent=11 // pred_check_branch
        %210 = sbr.rel (%p208) target = $region20
      $region19: #{attentional_propagation_forward.5} parent=11 // pred_region
        _
      $region20: #{attentional_propagation_forward.5} parent=11 // pred_fallthru
        _
      // Predicated region
      $region21: #{attentional_propagation_forward.5} parent=11 // pred_check
        %p211 = pneg %p141
      $region22: #{attentional_propagation_forward.5} parent=11 // pred_check_branch
        %213 = sbr.rel (%p211) target = $region24
      $region23: #{attentional_propagation_forward.5} parent=11 // pred_region
        _
      $region24: #{attentional_propagation_forward.5} parent=11 // pred_fallthru
        _
      // Predicated region
      $region25: #{attentional_propagation_forward.5} parent=11 // pred_check
        %p214 = pneg %p162
      $region26: #{attentional_propagation_forward.5} parent=11 // pred_check_branch
        %216 = sbr.rel (%p214) target = $region28
      $region27: #{attentional_propagation_forward.5} parent=11 // pred_region
        _
      $region28: #{attentional_propagation_forward.5} parent=11 // pred_fallthru
        _
    $region12: #{attentional_propagation_forward.5} parent=5 // pred_fallthru
      _
    %p217 = scmp.lt.s32.totalorder %s12, 2
    // Predicated region
    $region29: #{attentional_propagation_forward.5} parent=5 // pred_check
      %p218 = pneg %p217
    $region30: #{attentional_propagation_forward.5} parent=5 // pred_check_branch
      %220 = sbr.rel (%p218) target = $region32
    $region31: #{attentional_propagation_forward.5} parent=5 // pred_region
      // Predicated region
      $region33: #{attentional_propagation_forward.5} parent=31 // pred_check
        %p221 = pneg %p46
      $region34: #{attentional_propagation_forward.5} parent=31 // pred_check_branch
        %223 = sbr.rel (%p221) target = $region36
      $region35: #{attentional_propagation_forward.5} parent=31 // pred_region
        %p224 = scmp.lt.s32.totalorder %s19, 1
        %s225 = scalar_select %p224, %s19, 1
        %p226 = scmp.lt.s32.totalorder %s20, 0
        %s227 = scalar_select %p226, %s20, 0
        %s228 = sadd.s32 %s227, %s225
        %s229 = smul.addr %s228, 4
        %s230 = scalar_lea.vmem %s0, %s229
      $region36: #{attentional_propagation_forward.5} parent=31 // pred_fallthru
        _
      // Predicated region
      $region37: #{attentional_propagation_forward.5} parent=31 // pred_check
        %p231 = pneg %p114
      $region38: #{attentional_propagation_forward.5} parent=31 // pred_check_branch
        %233 = sbr.rel (%p231) target = $region40
      $region39: #{attentional_propagation_forward.5} parent=31 // pred_region
        %p234 = scmp.lt.s32.totalorder %s19, 1
        %s235 = scalar_select %p234, %s19, 1
        %s236 = smul.addr %s235, 4
        %s237 = scalar_lea.vmem %s3, %s236
      $region40: #{attentional_propagation_forward.5} parent=31 // pred_fallthru
        _
    $region32: #{attentional_propagation_forward.5} parent=5 // pred_fallthru
      _
    %p238 = scmp.le.s32.totalorder 1, %s12
    %p239 = scmp.lt.s32.totalorder %s12, 3
    %p240 = pnand %p238, %p239
    %p241 = pneg %p240
    // Predicated region
    $region41: #{attentional_propagation_forward.5} parent=5 // pred_check
      _
    $region42: #{attentional_propagation_forward.5} parent=5 // pred_check_branch
      %243 = sbr.rel (%p240) target = $region44
    $region43: #{attentional_propagation_forward.5} parent=5 // pred_region
      %s244 = ssub.s32 %s12, 1
      %p245 = scmp.lt.s32.totalorder %s21, 1
      %s246 = scalar_select %p245, %s21, 1
      %p247 = scmp.lt.s32.totalorder %s22, 0
      %s248 = scalar_select %p247, %s22, 0
      %s249 = sadd.s32 %s248, %s246
      %s250 = smul.addr %s249, 4
      %s251 = scalar_lea.vmem %s0, %s250
      %p252 = pneg %p52
      %p253 = pneg %p49
      %p254 = pneg %p73
      %p255 = pneg %p70
      %p256 = pneg %p94
      %p257 = pneg %p91
      %p258 = scmp.lt.s32.totalorder %s21, 1
      %s259 = scalar_select %p258, %s21, 1
      %s260 = smul.addr %s259, 4
      %s261 = scalar_lea.vmem %s3, %s260
      %p262 = pneg %p120
      %p263 = pneg %p117
      %p264 = pneg %p141
      %p265 = pneg %p138
      %p266 = pneg %p162
      %p267 = pneg %p159
      %p268 = pneg %p190
      %p269 = pneg %p187
      %p270 = scmp.lt.s32.totalorder %s21, 1
      %s271 = scalar_select %p270, %s21, 1
      %p272 = scmp.lt.s32.totalorder %s22, 0
      %s273 = scalar_select %p272, %s22, 0
      %s274 = sadd.s32 %s273, %s271
      %s275 = smul.addr %s274, 4
      %s276 = scalar_lea.vmem %s6, %s275
      %p277 = scmp.lt.s32.totalorder %s21, 1
      %s278 = scalar_select %p277, %s21, 1
      %p279 = scmp.lt.s32.totalorder %s22, 0
      %s280 = scalar_select %p279, %s22, 0
      %s281 = sadd.s32 %s280, %s278
      %s282 = smul.addr %s281, 4
      %s283 = scalar_lea.vmem %s0, %s282
      %p284 = scmp.lt.s32.totalorder %s21, 1
      %s285 = scalar_select %p284, %s21, 1
      %s286 = smul.addr %s285, 4
      %s287 = scalar_lea.vmem %s3, %s286
      %p288 = scmp.lt.s32.totalorder %s21, 1
      %s289 = scalar_select %p288, %s21, 1
      %p290 = scmp.lt.s32.totalorder %s22, 0
      %s291 = scalar_select %p290, %s22, 0
      %s292 = sadd.s32 %s291, %s289
      %s293 = smul.addr %s292, 4
      %s294 = scalar_lea.vmem %s6, %s293
      %v296 = vld [vmem:[%s283] sm:$0xf]
      %v297 = vld [vmem:[%s1] sm:$0xf]
      %v298 = vld [vmem:[%s1 + $0x4] sm:$0xf]
      %v299 = vld [vmem:[%s1 + $0x8] sm:$0xf]
      %v300 = vld [vmem:[%s1 + $0xc] sm:$0xf]
      %v301 = vld [vmem:[%s2] sm:$0x1]
      %v303 = vperm.slane %v301, 0
      %v309 = vunpack.c.l.b16 %v297
      %v310 = vunpack.c.l.b16 %v298
      %v311 = vunpack.c.l.b16 %v299
      %v312 = vunpack.c.l.b16 %v300
      %v313 = vpack.c.b16 %v310, %v309
      %v314 = vpack.c.b16 %v312, %v311
      %vm317 = vcmask 261120
      %v319 = vsel %vm317, %v296, 0
      %321 = vmatpush.bf16.msra.mxu0 0
      %322 = vmatpush.bf16.msra.mxu0 0
      %323 = vmatpush.bf16.msra.mxu0 0
      %324 = vmatpush.bf16.msra.mxu0 0
      %325 = vmatpush.bf16.msra.mxu0 0
      %326 = vmatpush.bf16.msra.mxu0 0
      %327 = vmatpush.bf16.msra.mxu0 %v314
      %328 = vmatpush.bf16.msra.mxu0 %v313
      %329 = vmatmul.bf16.gmra.mxu0 %v319
      %v330 = vpop.f32.mrf.mxu0
      %v331 = vadd.f32 %v303, %v330
      %v332 = vpop.f32.mrf.mxu0
      %333 = vdwg.mxu0
      %v334 = vpack.c.bf16 %v331, %v331
      %v335 = vld [vmem:[%s287] sm:$0xf]
      %vm336 = vcmask 64512
      %v338 = vsel %vm336, %v334, 0
      %v341 = vsel %vm336, %v335, 0
      %343 = vmatpush.bf16.xpose.msra.mxu0 0
      %344 = vmatpush.bf16.xpose.msra.mxu0 0
      %345 = vmatpush.bf16.xpose.msra.mxu0 0
      %346 = vmatpush.bf16.xpose.msra.mxu0 0
      %347 = vmatpush.bf16.xpose.msra.mxu0 0
      %348 = vmatpush.bf16.xpose.msra.mxu0 0
      %349 = vmatpush.bf16.xpose.msra.mxu0 0
      %350 = vmatpush.bf16.xpose.msra.mxu0 %v341
      %351 = vmatmul.bf16.gmra.mxu0 %v338
      %v352 = vpop.f32.mrf.mxu0
      %v353 = vadd.f32 0.0, %v352
      %v354 = vpop.f32.mrf.mxu0
      %355 = vdwg.mxu0
      %v356 = vsel %vm336, %v353, -inf
      %357 = vmax.xlane.f32.xlu0 %v356
      %v358 = vpop.xlane.xlu0 %357
      %v359 = vsub.f32 %v353, %v358
      %v360 = vmul.f32 %v359, 1.442695
      %v361 = vpow.pop %v360
      %v362 = vsel %vm336, %v361, 0.0
      %363 = vadd.xlane.f32.xlu0 %v362
      %v364 = vpop.xlane.xlu0 %363
      %v365 = vpack.c.bf16 %v361, %v361
      %v367 = vunpack.c.l.b16 %v335
      %v368 = vpack.c.b16 %v367, %v367
      %369 = vrot.lane.b32.xlu0 %v368, 96
      %v370 = vpop.permute.xlu0 %369
      %v372 = vsel %vm336, %v365, 0
      %vm374 = vcmask 1043456
      %v376 = vsel %vm374, %v370, 0
      %378 = vmatpush.bf16.msra.mxu0 0
      %379 = vmatpush.bf16.msra.mxu0 0
      %380 = vmatpush.bf16.msra.mxu0 0
      %381 = vmatpush.bf16.msra.mxu0 0
      %382 = vmatpush.bf16.msra.mxu0 0
      %383 = vmatpush.bf16.msra.mxu0 0
      %384 = vmatpush.bf16.msra.mxu0 0
      %385 = vmatpush.bf16.msra.mxu0 %v376
      %386 = vmatmul.bf16.gmra.mxu0 %v372
      %v387 = vpop.f32.mrf.mxu0
      %v388 = vadd.f32 0.0, %v387
      %v389 = vpop.f32.mrf.mxu0
      %390 = vdwg.mxu0
      %v391 = vrcp.pop %v364
      %v392 = vmul.f32 %v388, %v391
      %393 = vst.msk [vmem:[#allocation2] sm:$0xff] %vm336, %v392
      %v395 = vunpack.c.l.b16 %v334
      %v396 = vpack.c.b16 %v395, %v395
      %397 = vrot.lane.b32.xlu0 %v396, 120
      %v398 = vpop.permute.xlu0 %397
      %399 = vrot.lane.b32.xlu0 %v368, 120
      %v400 = vpop.permute.xlu0 %399
      %v402 = vsel %vm336, %v398, 0
      %v405 = vsel %vm336, %v400, 0
      %407 = vmatpush.bf16.xpose.msra.mxu0 0
      %408 = vmatpush.bf16.xpose.msra.mxu0 0
      %409 = vmatpush.bf16.xpose.msra.mxu0 0
      %410 = vmatpush.bf16.xpose.msra.mxu0 0
      %411 = vmatpush.bf16.xpose.msra.mxu0 0
      %412 = vmatpush.bf16.xpose.msra.mxu0 0
      %413 = vmatpush.bf16.xpose.msra.mxu0 0
      %414 = vmatpush.bf16.xpose.msra.mxu0 %v405
      %415 = vmatmul.bf16.gmra.mxu0 %v402
      %v416 = vpop.f32.mrf.mxu0
      %v417 = vadd.f32 0.0, %v416
      %v418 = vpop.f32.mrf.mxu0
      %419 = vdwg.mxu0
      %v420 = vsel %vm336, %v417, -inf
      %421 = vmax.xlane.f32.xlu0 %v420
      %v422 = vpop.xlane.xlu0 %421
      %v423 = vsub.f32 %v417, %v422
      %v424 = vmul.f32 %v423, 1.442695
      %v425 = vpow.pop %v424
      %v426 = vsel %vm336, %v425, 0.0
      %427 = vadd.xlane.f32.xlu0 %v426
      %v428 = vpop.xlane.xlu0 %427
      %v429 = vpack.c.bf16 %v425, %v425
      %430 = vrot.lane.b32.xlu0 %v368, 88
      %v431 = vpop.permute.xlu0 %430
      %v433 = vsel %vm336, %v429, 0
      %v436 = vsel %vm374, %v431, 0
      %438 = vmatpush.bf16.msra.mxu0 0
      %439 = vmatpush.bf16.msra.mxu0 0
      %440 = vmatpush.bf16.msra.mxu0 0
      %441 = vmatpush.bf16.msra.mxu0 0
      %442 = vmatpush.bf16.msra.mxu0 0
      %443 = vmatpush.bf16.msra.mxu0 0
      %444 = vmatpush.bf16.msra.mxu0 0
      %445 = vmatpush.bf16.msra.mxu0 %v436
      %446 = vmatmul.bf16.gmra.mxu0 %v433
      %v447 = vpop.f32.mrf.mxu0
      %v448 = vadd.f32 0.0, %v447
      %v449 = vpop.f32.mrf.mxu0
      %450 = vdwg.mxu0
      %v451 = vrcp.pop %v428
      %v452 = vmul.f32 %v448, %v451
      %454 = vrot.lane.b32.xlu0 %v452, 8
      %v455 = vpop.permute.xlu0 %454
      %vm457 = vcmask 130112
      %458 = vst.msk [vmem:[#allocation2] sm:$0xff] %vm457, %v455
      %459 = vrot.lane.b32.xlu0 %v396, 112
      %v460 = vpop.permute.xlu0 %459
      %461 = vrot.lane.b32.xlu0 %v368, 112
      %v462 = vpop.permute.xlu0 %461
      %v464 = vsel %vm336, %v460, 0
      %v467 = vsel %vm336, %v462, 0
      %469 = vmatpush.bf16.xpose.msra.mxu0 0
      %470 = vmatpush.bf16.xpose.msra.mxu0 0
      %471 = vmatpush.bf16.xpose.msra.mxu0 0
      %472 = vmatpush.bf16.xpose.msra.mxu0 0
      %473 = vmatpush.bf16.xpose.msra.mxu0 0
      %474 = vmatpush.bf16.xpose.msra.mxu0 0
      %475 = vmatpush.bf16.xpose.msra.mxu0 0
      %476 = vmatpush.bf16.xpose.msra.mxu0 %v467
      %477 = vmatmul.bf16.gmra.mxu0 %v464
      %v478 = vpop.f32.mrf.mxu0
      %v479 = vadd.f32 0.0, %v478
      %v480 = vpop.f32.mrf.mxu0
      %481 = vdwg.mxu0
      %v482 = vsel %vm336, %v479, -inf
      %483 = vmax.xlane.f32.xlu0 %v482
      %v484 = vpop.xlane.xlu0 %483
      %v485 = vsub.f32 %v479, %v484
      %v486 = vmul.f32 %v485, 1.442695
      %v487 = vpow.pop %v486
      %v488 = vsel %vm336, %v487, 0.0
      %489 = vadd.xlane.f32.xlu0 %v488
      %v490 = vpop.xlane.xlu0 %489
      %v491 = vpack.c.bf16 %v487, %v487
      %492 = vrot.lane.b32.xlu0 %v368, 80
      %v493 = vpop.permute.xlu0 %492
      %v495 = vsel %vm336, %v491, 0
      %v498 = vsel %vm374, %v493, 0
      %500 = vmatpush.bf16.msra.mxu0 0
      %501 = vmatpush.bf16.msra.mxu0 0
      %502 = vmatpush.bf16.msra.mxu0 0
      %503 = vmatpush.bf16.msra.mxu0 0
      %504 = vmatpush.bf16.msra.mxu0 0
      %505 = vmatpush.bf16.msra.mxu0 0
      %506 = vmatpush.bf16.msra.mxu0 0
      %507 = vmatpush.bf16.msra.mxu0 %v498
      %508 = vmatmul.bf16.gmra.mxu0 %v495
      %v509 = vpop.f32.mrf.mxu0
      %v510 = vadd.f32 0.0, %v509
      %v511 = vpop.f32.mrf.mxu0
      %512 = vdwg.mxu0
      %v513 = vrcp.pop %v490
      %v514 = vmul.f32 %v510, %v513
      %516 = vrot.lane.b32.xlu0 %v514, 16
      %v517 = vpop.permute.xlu0 %516
      %vm519 = vcmask 195712
      %520 = vst.msk [vmem:[#allocation2] sm:$0xff] %vm519, %v517
      %521 = vrot.lane.b32.xlu0 %v396, 104
      %v522 = vpop.permute.xlu0 %521
      %523 = vrot.lane.b32.xlu0 %v368, 104
      %v524 = vpop.permute.xlu0 %523
      %v526 = vsel %vm336, %v522, 0
      %v529 = vsel %vm336, %v524, 0
      %531 = vmatpush.bf16.xpose.msra.mxu0 0
      %532 = vmatpush.bf16.xpose.msra.mxu0 0
      %533 = vmatpush.bf16.xpose.msra.mxu0 0
      %534 = vmatpush.bf16.xpose.msra.mxu0 0
      %535 = vmatpush.bf16.xpose.msra.mxu0 0
      %536 = vmatpush.bf16.xpose.msra.mxu0 0
      %537 = vmatpush.bf16.xpose.msra.mxu0 0
      %538 = vmatpush.bf16.xpose.msra.mxu0 %v529
      %539 = vmatmul.bf16.gmra.mxu0 %v526
      %v540 = vpop.f32.mrf.mxu0
      %v541 = vadd.f32 0.0, %v540
      %v542 = vpop.f32.mrf.mxu0
      %543 = vdwg.mxu0
      %v544 = vsel %vm336, %v541, -inf
      %545 = vmax.xlane.f32.xlu0 %v544
      %v546 = vpop.xlane.xlu0 %545
      %v547 = vsub.f32 %v541, %v546
      %v548 = vmul.f32 %v547, 1.442695
      %v549 = vpow.pop %v548
      %v550 = vsel %vm336, %v549, 0.0
      %551 = vadd.xlane.f32.xlu0 %v550
      %v552 = vpop.xlane.xlu0 %551
      %v553 = vpack.c.bf16 %v549, %v549
      %554 = vrot.lane.b32.xlu0 %v368, 72
      %v555 = vpop.permute.xlu0 %554
      %v557 = vsel %vm336, %v553, 0
      %v560 = vsel %vm374, %v555, 0
      %562 = vmatpush.bf16.msra.mxu0 0
      %563 = vmatpush.bf16.msra.mxu0 0
      %564 = vmatpush.bf16.msra.mxu0 0
      %565 = vmatpush.bf16.msra.mxu0 0
      %566 = vmatpush.bf16.msra.mxu0 0
      %567 = vmatpush.bf16.msra.mxu0 0
      %568 = vmatpush.bf16.msra.mxu0 0
      %569 = vmatpush.bf16.msra.mxu0 %v560
      %570 = vmatmul.bf16.gmra.mxu0 %v557
      %v571 = vpop.f32.mrf.mxu0
      %v572 = vadd.f32 0.0, %v571
      %v573 = vpop.f32.mrf.mxu0
      %574 = vdwg.mxu0
      %v575 = vrcp.pop %v552
      %v576 = vmul.f32 %v572, %v575
      %578 = vrot.lane.b32.xlu0 %v576, 24
      %v579 = vpop.permute.xlu0 %578
      %vm581 = vcmask 261312
      %582 = vst.msk [vmem:[#allocation2] sm:$0xff] %vm581, %v579
      %v583 = vld [vmem:[#allocation2] sm:$0xff]
      %v584 = vpack.c.bf16 %v583, %v583
      %v585 = vld [vmem:[%s4] sm:$0xf]
      %v586 = vld [vmem:[%s4 + $0x4] sm:$0xf]
      %v587 = vld [vmem:[%s4 + $0x8] sm:$0xf]
      %v588 = vld [vmem:[%s4 + $0xc] sm:$0xf]
      %v589 = vld [vmem:[%s5] sm:$0x1]
      %v591 = vperm.slane %v589, 0
      %v597 = vunpack.c.l.b16 %v585
      %v598 = vunpack.c.l.b16 %v586
      %v599 = vunpack.c.l.b16 %v587
      %v600 = vunpack.c.l.b16 %v588
      %v601 = vpack.c.b16 %v598, %v597
      %v602 = vpack.c.b16 %v600, %v599
      %v606 = vsel %vm317, %v584, 0
      %608 = vmatpush.bf16.msra.mxu0 0
      %609 = vmatpush.bf16.msra.mxu0 0
      %610 = vmatpush.bf16.msra.mxu0 0
      %611 = vmatpush.bf16.msra.mxu0 0
      %612 = vmatpush.bf16.msra.mxu0 0
      %613 = vmatpush.bf16.msra.mxu0 0
      %614 = vmatpush.bf16.msra.mxu0 %v602
      %615 = vmatpush.bf16.msra.mxu0 %v601
      %616 = vmatmul.bf16.gmra.mxu0 %v606
      %v617 = vpop.f32.mrf.mxu0
      %v618 = vadd.f32 %v591, %v617
      %v619 = vpop.f32.mrf.mxu0
      %620 = vdwg.mxu0
      %v621 = vpack.c.bf16 %v618, %v618
      %vm622 = vcmask 257024
      %623 = vst.msk [vmem:[%s294] sm:$0xf] %vm622, %v621
      %p624 = scmp.lt.s32.totalorder %s21, 1
      %s625 = scalar_select %p624, %s21, 1
      %p626 = scmp.lt.s32.totalorder %s22, 0
      %s627 = scalar_select %p626, %s22, 0
      %s628 = sadd.s32 %s627, %s625
      %s629 = smul.addr %s628, 4
      %s630 = scalar_lea.vmem %s6, %s629
      // Predicated region
      $region45: #{attentional_propagation_forward.5} parent=43 // pred_check
        %p631 = pneg %p187
      $region46: #{attentional_propagation_forward.5} parent=43 // pred_check_branch
        %633 = sbr.rel (%p631) target = $region48
      $region47: #{attentional_propagation_forward.5} parent=43 // pred_region
        _
      $region48: #{attentional_propagation_forward.5} parent=43 // pred_fallthru
        _
    $region44: #{attentional_propagation_forward.5} parent=5 // pred_fallthru
      _
    %p634 = scmp.le.s32.totalorder 2, %s12
    // Predicated region
    $region49: #{attentional_propagation_forward.5} parent=5 // pred_check
      %p635 = pneg %p634
    $region50: #{attentional_propagation_forward.5} parent=5 // pred_check_branch
      %637 = sbr.rel (%p635) target = $region52
    $region51: #{attentional_propagation_forward.5} parent=5 // pred_region
      %s638 = ssub.s32 %s12, 2
      // Predicated region
      $region53: #{attentional_propagation_forward.5} parent=51 // pred_check
        %p639 = pneg %p193
      $region54: #{attentional_propagation_forward.5} parent=51 // pred_check_branch
        %641 = sbr.rel (%p639) target = $region56
      $region55: #{attentional_propagation_forward.5} parent=51 // pred_region
        %p642 = scmp.lt.s32.totalorder %s23, 1
        %s643 = scalar_select %p642, %s23, 1
        %p644 = scmp.lt.s32.totalorder %s24, 0
        %s645 = scalar_select %p644, %s24, 0
        %s646 = sadd.s32 %s645, %s643
        %s647 = smul.addr %s646, 4
        %s648 = scalar_lea.vmem %s6, %s647
      $region56: #{attentional_propagation_forward.5} parent=51 // pred_fallthru
        _
    $region52: #{attentional_propagation_forward.5} parent=5 // pred_fallthru
      _
  $region6: #{attentional_propagation_forward.5} parent=0 // loop_footer
    %s16 = sadd.s32 1, %s12
  $region7: #{attentional_propagation_forward.5} parent=0 // loop_footer_branch
    %11 = sbr.rel target = $region3
  $region8: #{attentional_propagation_forward.5} parent=0 // loop_exit
    _

// kernel: attentional_propagation_forward.6
$region0: #{attentional_propagation_forward.6}
  #allocation0 [shape = 'u32[]', space=smem, size = 0x4, offset = 0x4, fixed_abs, tag = 'smem constant byte address 0x4 - core index']
  #allocation1 [shape = 'u32[72,128]{1,0:T(1,128)}', space=vmem, size = 0x9000, scoped, tag = 'internal scratch']
  %s0 = inlined_call_operand.vmem [shape: bf16[16,32], index: 0, kind: input, shape index: {}]
  %s1 = inlined_call_operand.vmem [shape: bf16[16,32], index: 1, kind: input, shape index: {}]
  %s2 = inlined_call_operand.vmem [shape: bf16[32,64], index: 2, kind: input, shape index: {}]
  %s3 = inlined_call_operand.vmem [shape: bf16[32,64], index: 3, kind: input, shape index: {}]
  %s4 = inlined_call_operand.vmem [shape: f32[1,64], index: 4, kind: input, shape index: {}]
  %s5 = inlined_call_operand.vmem [shape: bf16[16,64], index: 5, kind: output, shape index: {0}]
  %s6 = inlined_call_operand.vmem [shape: f32[1,1,64], index: 6, kind: output, shape index: {1}]
  %s7 = inlined_call_operand.vmem [shape: f32[1,1,64], index: 7, kind: output, shape index: {2}]
  %8 = xla_tuple %s5, %s6, %s7
  %s9 = sld [smem:[#allocation0]]
  $region46: #{attentional_propagation_forward.6} parent=0
    _
  %s11 = ssub.s32 1, %s9
  %s12 = scalar_select 0, %s11, %s9
  // Predicated region
  $region2: #{attentional_propagation_forward.6} parent=0 // pred_check
    _
  $region3: #{attentional_propagation_forward.6} parent=0 // pred_check_branch
    %14 = sbr.rel (0) target = $region5
  $region4: #{attentional_propagation_forward.6} parent=0 // pred_region
    _
  $region5: #{attentional_propagation_forward.6} parent=0 // pred_fallthru
    _
  // Predicated region
  $region6: #{attentional_propagation_forward.6} parent=0 // pred_check
    _
  $region7: #{attentional_propagation_forward.6} parent=0 // pred_check_branch
    %16 = sbr.rel (0) target = $region9
  $region8: #{attentional_propagation_forward.6} parent=0 // pred_region
    _
  $region9: #{attentional_propagation_forward.6} parent=0 // pred_fallthru
    _
  // Predicated region
  $region10: #{attentional_propagation_forward.6} parent=0 // pred_check
    _
  $region11: #{attentional_propagation_forward.6} parent=0 // pred_check_branch
    %18 = sbr.rel (0) target = $region13
  $region12: #{attentional_propagation_forward.6} parent=0 // pred_region
    _
  $region13: #{attentional_propagation_forward.6} parent=0 // pred_fallthru
    _
  // Predicated region
  $region14: #{attentional_propagation_forward.6} parent=0 // pred_check
    _
  $region15: #{attentional_propagation_forward.6} parent=0 // pred_check_branch
    %20 = sbr.rel (0) target = $region17
  $region16: #{attentional_propagation_forward.6} parent=0 // pred_region
    _
  $region17: #{attentional_propagation_forward.6} parent=0 // pred_fallthru
    _
  // Predicated region
  $region18: #{attentional_propagation_forward.6} parent=0 // pred_check
    _
  $region19: #{attentional_propagation_forward.6} parent=0 // pred_check_branch
    %22 = sbr.rel (0) target = $region21
  $region20: #{attentional_propagation_forward.6} parent=0 // pred_region
    _
  $region21: #{attentional_propagation_forward.6} parent=0 // pred_fallthru
    _
  %v24 = vld [vmem:[%s0] sm:$0xf]
  %v25 = vld [vmem:[%s0 + $0x4] sm:$0xf]
  %v26 = vld [vmem:[%s2] sm:$0xf]
  %v27 = vld [vmem:[%s2 + $0x4] sm:$0xf]
  %v28 = vld [vmem:[%s2 + $0x8] sm:$0xf]
  %v29 = vld [vmem:[%s2 + $0xc] sm:$0xf]
  %v30 = vld [vmem:[%s1] sm:$0xf]
  %v31 = vld [vmem:[%s1 + $0x4] sm:$0xf]
  %v32 = vld [vmem:[%s3] sm:$0xf]
  %v33 = vld [vmem:[%s3 + $0x4] sm:$0xf]
  %v34 = vld [vmem:[%s3 + $0x8] sm:$0xf]
  %v35 = vld [vmem:[%s3 + $0xc] sm:$0xf]
  %v38 = vunpack.c.l.b16 %v30
  %v39 = vunpack.c.l.b16 %v31
  %v40 = vpack.c.b16 %v39, %v38
  %v45 = vunpack.c.l.b16 %v32
  %v46 = vunpack.c.l.b16 %v33
  %v47 = vunpack.c.l.b16 %v34
  %v48 = vunpack.c.l.b16 %v35
  %v49 = vpack.c.b16 %v46, %v45
  %v50 = vpack.c.b16 %v48, %v47
  %vm53 = vcmask 261120
  %v55 = vsel %vm53, %v40, 0
  %57 = vmatpush.bf16.msra.mxu0 0
  %58 = vmatpush.bf16.msra.mxu0 0
  %59 = vmatpush.bf16.msra.mxu0 0
  %60 = vmatpush.bf16.msra.mxu0 0
  %61 = vmatpush.bf16.msra.mxu0 0
  %62 = vmatpush.bf16.msra.mxu0 0
  %63 = vmatpush.bf16.msra.mxu0 %v50
  %64 = vmatpush.bf16.msra.mxu0 %v49
  %65 = vmatmul.bf16.gmra.mxu0 %v55
  %v66 = vpop.f32.mrf.mxu0
  %v67 = vadd.f32 0.0, %v66
  %v68 = vpop.f32.mrf.mxu0
  %v69 = vadd.f32 0.0, %v68
  %70 = vdwg.mxu0
  %v73 = vunpack.c.l.b16 %v24
  %v74 = vunpack.c.l.b16 %v25
  %v75 = vpack.c.b16 %v74, %v73
  %v80 = vunpack.c.l.b16 %v26
  %v81 = vunpack.c.l.b16 %v27
  %v82 = vunpack.c.l.b16 %v28
  %v83 = vunpack.c.l.b16 %v29
  %v84 = vpack.c.b16 %v81, %v80
  %v85 = vpack.c.b16 %v83, %v82
  %v89 = vsel %vm53, %v75, 0
  %91 = vmatpush.bf16.msra.mxu0 0
  %92 = vmatpush.bf16.msra.mxu0 0
  %93 = vmatpush.bf16.msra.mxu0 0
  %94 = vmatpush.bf16.msra.mxu0 0
  %95 = vmatpush.bf16.msra.mxu0 0
  %96 = vmatpush.bf16.msra.mxu0 0
  %97 = vmatpush.bf16.msra.mxu0 %v85
  %98 = vmatpush.bf16.msra.mxu0 %v84
  %99 = vmatmul.bf16.gmra.mxu0 %v89
  %v100 = vpop.f32.mrf.mxu0
  %v101 = vadd.f32 %v67, %v100
  %v102 = vpop.f32.mrf.mxu0
  %v103 = vadd.f32 %v69, %v102
  %104 = vdwg.mxu0
  %v105 = vld [vmem:[%s4] sm:$0x1]
  %v107 = vperm.slane %v105, 0
  %v109 = vadd.f32 %v101, %v107
  %v110 = vadd.f32 %v103, %v107
  %v111 = vpack.c.bf16 %v109, %v109
  %v112 = vpack.c.bf16 %v110, %v110
  %vm113 = vcmask 519168
  %114 = vst.msk [vmem:[%s5] sm:$0xf] %vm113, %v111
  %115 = vst.msk [vmem:[%s5 + $0x4] sm:$0xf] %vm113, %v112
  %vm116 = vcmask 523264
  %v117 = vsel %vm116, %v109, 0.0
  %v118 = vsel %vm116, %v110, 0.0
  %v119 = vadd.f32 %v117, %v118
  %v120 = vrot.slane %v119, 4
  %v121 = vadd.f32 %v119, %v120
  %v122 = vrot.slane %v121, 2
  %v123 = vadd.f32 %v121, %v122
  %v124 = vrot.slane %v123, 1
  %v125 = vadd.f32 %v123, %v124
  %vm126 = vcmask 516096
  %127 = vst.msk [vmem:[%s6] sm:$0x1] %vm126, %v125
  %v128 = vmul.f32 %v109, %v109
  %v129 = vmul.f32 %v110, %v110
  %v130 = vsel %vm116, %v128, 0.0
  %v131 = vsel %vm116, %v129, 0.0
  %v132 = vadd.f32 %v130, %v131
  %v133 = vrot.slane %v132, 4
  %v134 = vadd.f32 %v132, %v133
  %v135 = vrot.slane %v134, 2
  %v136 = vadd.f32 %v134, %v135
  %v137 = vrot.slane %v136, 1
  %v138 = vadd.f32 %v136, %v137
  %139 = vst.msk [vmem:[%s7] sm:$0x1] %vm126, %v138
  // Predicated region
  $region22: #{attentional_propagation_forward.6} parent=0 // pred_check
    _
  $region23: #{attentional_propagation_forward.6} parent=0 // pred_check_branch
    %141 = sbr.rel (0) target = $region25
  $region24: #{attentional_propagation_forward.6} parent=0 // pred_region
    _
  $region25: #{attentional_propagation_forward.6} parent=0 // pred_fallthru
    _
  // Predicated region
  $region26: #{attentional_propagation_forward.6} parent=0 // pred_check
    _
  $region27: #{attentional_propagation_forward.6} parent=0 // pred_check_branch
    %143 = sbr.rel (0) target = $region29
  $region28: #{attentional_propagation_forward.6} parent=0 // pred_region
    _
  $region29: #{attentional_propagation_forward.6} parent=0 // pred_fallthru
    _
  // Predicated region
  $region30: #{attentional_propagation_forward.6} parent=0 // pred_check
    _
  $region31: #{attentional_propagation_forward.6} parent=0 // pred_check_branch
    %145 = sbr.rel (0) target = $region33
  $region32: #{attentional_propagation_forward.6} parent=0 // pred_region
    _
  $region33: #{attentional_propagation_forward.6} parent=0 // pred_fallthru
    _
  // Predicated region
  $region34: #{attentional_propagation_forward.6} parent=0 // pred_check
    _
  $region35: #{attentional_propagation_forward.6} parent=0 // pred_check_branch
    %147 = sbr.rel (0) target = $region37
  $region36: #{attentional_propagation_forward.6} parent=0 // pred_region
    _
  $region37: #{attentional_propagation_forward.6} parent=0 // pred_fallthru
    _
  // Predicated region
  $region38: #{attentional_propagation_forward.6} parent=0 // pred_check
    _
  $region39: #{attentional_propagation_forward.6} parent=0 // pred_check_branch
    %149 = sbr.rel (0) target = $region41
  $region40: #{attentional_propagation_forward.6} parent=0 // pred_region
    _
  $region41: #{attentional_propagation_forward.6} parent=0 // pred_fallthru
    _
  // Predicated region
  $region42: #{attentional_propagation_forward.6} parent=0 // pred_check
    _
  $region43: #{attentional_propagation_forward.6} parent=0 // pred_check_branch
    %151 = sbr.rel (0) target = $region45
  $region44: #{attentional_propagation_forward.6} parent=0 // pred_region
    _
  $region45: #{attentional_propagation_forward.6} parent=0 // pred_fallthru
    _

</llo_original>
